<compile_context>
chip_gen: v7x
topology: tpu7x:2x2x1
jax: 0.10.0
libtpu: 0.0.40
codegen_flags: <defaults>
</compile_context>

<pallas_src>
import jax
import jax.numpy as jnp
import numpy as np
from jax.experimental import pallas as pl
from jax.experimental.pallas import tpu as pltpu

_CONSTANT = 10.0    # self.CONSTANT in the PyTorch module (fixed, non-learned)
_TILE_ROWS = 2048   # lane-axis tile: rows whose risk sums are accumulated / output width
_TILE_COLS = 512    # sublane-axis tile: candidate risk-set members reduced per step


def _round_up(x, m):
    return ((x + m - 1) // m) * m


def _surv_ple_kernel(t_col_ref, exp_col_ref, t_row_ref, theta_row_ref, e_row_ref,
                     vals_ref):
    """Grid = (row_tiles, col_tiles); column axis is the reduction (innermost).

    For row tile i / column tile j the output block (resident across j) accumulates
        vals[0, a] += sum_b where(T[col_b] >= T[row_a], exp(min(theta[col_b], C)), 0)
    and on the last column tile is overwritten with
        vals[0, a] = (min(theta[row_a], C) - log(vals[0, a])) * E[row_a]
    """
    j = pl.program_id(1)

    @pl.when(j == 0)
    def _init():
        vals_ref[...] = jnp.zeros_like(vals_ref)

    # Column-role vectors arrive lane-dense (1, TC); swing them onto the sublane axis
    # in-kernel (XLU relayout, cheap and off the VPU) so the risk-set reduction stays
    # a sublane reduce and the accumulator/output stay lane-dense (1, TR).
    t_col = jnp.transpose(t_col_ref[...])      # (TC, 1)
    exp_col = jnp.transpose(exp_col_ref[...])  # (TC, 1), exp(min(theta, C)) from wrapper

    # mask[b, a] = (T[col_b] >= T[row_a]). Padded columns carry exp == 0 (never
    # contribute); padded rows carry T == -inf (always "at risk", risk > 0) and E == 0.
    mask = t_col >= t_row_ref[...]                               # (TC, TR) via broadcast
    contrib = jnp.where(mask, exp_col, jnp.float32(0.0))         # select, no f32 R matrix
    vals_ref[...] += jnp.sum(contrib, axis=0, keepdims=True)     # (1, TR) lane-dense

    @pl.when(j == pl.num_programs(1) - 1)
    def _finalize():
        vals_ref[...] = (theta_row_ref[...] - jnp.log(vals_ref[...])) * e_row_ref[...]


def surv_ple_loss(y_hat, T, E, *, tile_rows=_TILE_ROWS, tile_cols=_TILE_COLS):
    """Pallas implementation of SurvPLE.forward(y_hat, T, E)."""
    # Hoisted O(n) preprocessing: clamp (jnp.minimum == torch.where(y > C, C, y)) and exp.
    theta = jnp.minimum(y_hat.reshape(-1).astype(jnp.float32), jnp.float32(_CONSTANT))
    exp_theta = jnp.exp(theta)
    t = T.reshape(-1).astype(jnp.float32)
    e = E.reshape(-1).astype(jnp.float32)
    n = theta.shape[0]

    # Pad to a multiple of the column tile (bounds padding waste to < tile_cols
    # samples), then pick the largest row tile that divides n_pad.
    n_pad = _round_up(n, tile_cols)
    tc = min(tile_cols, n_pad)
    tr = tc
    while tr * 2 <= tile_rows and n_pad % (tr * 2) == 0:
        tr *= 2
    # Keep >= 2 row tiles when possible so v7x's second TensorCore gets work
    # ("parallel" row axis); harmless on single-TC v5e/v6e.
    if n_pad // tr == 1 and tr >= 256:
        tr //= 2

    pad = n_pad - n
    # Padded columns must never contribute to any risk sum -> exp padded with 0.
    # Padded rows must contribute 0 to the loss            -> E padded with 0.
    # Padded rows get T = -inf so their risk sum is the full (positive) total -> log finite.
    theta_p = jnp.pad(theta, (0, pad))
    exp_p = jnp.pad(exp_theta, (0, pad))
    t_p = jnp.pad(t, (0, pad), constant_values=-jnp.inf)
    e_p = jnp.pad(e, (0, pad))

    grid = (n_pad // tr, n_pad // tc)

    vals = pl.pallas_call(
        _surv_ple_kernel,
        out_shape=jax.ShapeDtypeStruct((1, n_pad), jnp.float32),
        grid_spec=pltpu.PrefetchScalarGridSpec(
            num_scalar_prefetch=0,
            grid=grid,
            in_specs=[
                pl.BlockSpec((1, tc), lambda i, j: (0, j)),  # T,               column role
                pl.BlockSpec((1, tc), lambda i, j: (0, j)),  # exp(min(th, C)), column role
                pl.BlockSpec((1, tr), lambda i, j: (0, i)),  # T,               row role
                pl.BlockSpec((1, tr), lambda i, j: (0, i)),  # min(theta, C),   row role
                pl.BlockSpec((1, tr), lambda i, j: (0, i)),  # E,               row role
            ],
            out_specs=pl.BlockSpec((1, tr), lambda i, j: (0, i)),
        ),
        compiler_params=pltpu.CompilerParams(
            # Row tiles are independent -> parallel (shards across both TCs on v7x);
            # the column axis carries the risk-sum accumulation -> arbitrary, last.
            dimension_semantics=("parallel", "arbitrary"),
            vmem_limit_bytes=32 * 1024 * 1024),
    )(t_p.reshape(1, n_pad), exp_p.reshape(1, n_pad),
      t_p.reshape(1, n_pad), theta_p.reshape(1, n_pad), e_p.reshape(1, n_pad))

    # loss = -mean over the true batch (padded rows excluded; divide by true n).
    return -(jnp.sum(vals[0, :n]) / jnp.float32(n))


def _surv_ple_ref(y_hat, T, E):
    """Pure-JAX reference mirroring the PyTorch module."""
    c = jnp.float32(_CONSTANT)
    y = jnp.where(y_hat > c, c, y_hat)
    theta = y.reshape(-1).astype(jnp.float32)
    t = T.astype(jnp.float32).reshape(-1)
    r = (t[None, :] >= t[:, None]).astype(jnp.float32)
    exp_theta = jnp.exp(theta)
    risk = jnp.sum(exp_theta[None, :] * r, axis=1)
    return -jnp.mean((theta - jnp.log(risk)) * E.astype(jnp.float32).reshape(-1))


if __name__ == "__main__":
    key = jax.random.PRNGKey(0)

    # n=8: single (halved) row tile path; n=300: padding path; n=1100: multi-column-tile
    # accumulation exercising the init/finalize pattern and multiple row tiles.
    for n_batch in (8, 300, 1100):
        k1, k2, k3 = jax.random.split(jax.random.fold_in(key, n_batch), 3)
        # y_hat: model risk scores, shape (n, 1) as a survival head would emit.
        y_hat = jax.random.normal(k1, (n_batch, 1), dtype=jnp.float32) * 4.0
        # T: last observed times (no ties by construction).
        T = jax.random.permutation(
            k2, jnp.arange(1.0, n_batch + 1.0, dtype=jnp.float32))
        # E: event indicators in {0, 1}.
        E = (jax.random.uniform(k3, (n_batch,)) > 0.4).astype(jnp.float32)

        loss = surv_ple_loss(y_hat, T, E)
        jax.block_until_ready(loss)

        ref = _surv_ple_ref(y_hat, T, E)
        np.testing.assert_allclose(np.asarray(loss), np.asarray(ref),
                                   rtol=3e-5, atol=3e-5)

    print("KERNEL_OK")
</pallas_src>

<mosaic_0001>
module attributes {stable_mosaic.version = 11 : i64} {
  func.func @_surv_ple_kernel(%arg0: i32, %arg1: i32, %arg2: memref<1x512xf32, #tpu.memory_space<vmem>>, %arg3: memref<1x512xf32, #tpu.memory_space<vmem>>, %arg4: memref<1x256xf32, #tpu.memory_space<vmem>>, %arg5: memref<1x256xf32, #tpu.memory_space<vmem>>, %arg6: memref<1x256xf32, #tpu.memory_space<vmem>>, %arg7: memref<1x256xf32, #tpu.memory_space<vmem>>) attributes {dimension_semantics = [#tpu.dimension_semantics<parallel>, #tpu.dimension_semantics<arbitrary>], iteration_bounds = array<i64: 2, 1>, scalar_prefetch = 0 : i64, scratch_operands = 0 : i64, tpu.core_type = #tpu.core_type<tc>, window_params = [{transform_indices = @transform_0, window_bounds = array<i64: 1, 512>}, {transform_indices = @transform_1, window_bounds = array<i64: 1, 512>}, {transform_indices = @transform_2, window_bounds = array<i64: 1, 256>}, {transform_indices = @transform_3, window_bounds = array<i64: 1, 256>}, {transform_indices = @transform_4, window_bounds = array<i64: 1, 256>}, {transform_indices = @transform_5, window_bounds = array<i64: 1, 256>}]} {
    %c0_i32 = arith.constant 0 : i32
    %0 = arith.cmpi eq, %arg1, %c0_i32 : i32
    %1 = arith.extui %0 : i1 to i32
    %c0_i32_0 = arith.constant 0 : i32
    %2 = arith.cmpi ne, %1, %c0_i32_0 : i32
    scf.if %2 {
      %cst_13 = arith.constant 0.000000e+00 : f32
      %23 = vector.broadcast %cst_13 : f32 to vector<1x256xf32>
      %c0_14 = arith.constant 0 : index
      %c0_15 = arith.constant 0 : index
      %24 = vector.load %arg7[%c0_14, %c0_15] : memref<1x256xf32, #tpu.memory_space<vmem>>, vector<1x256xf32>
      tpu.vector_store %arg7[%c0_14, %c0_15], %23 {strides = array<i32>} : memref<1x256xf32, #tpu.memory_space<vmem>>, vector<1x256xf32>,
    } else {
    }
    %c0 = arith.constant 0 : index
    %c0_1 = arith.constant 0 : index
    %3 = vector.load %arg2[%c0, %c0_1] : memref<1x512xf32, #tpu.memory_space<vmem>>, vector<1x512xf32>
    %4 = tpu.transpose %3, [1, 0] : vector<1x512xf32> -> vector<512x1xf32>
    %c0_2 = arith.constant 0 : index
    %c0_3 = arith.constant 0 : index
    %5 = vector.load %arg3[%c0_2, %c0_3] : memref<1x512xf32, #tpu.memory_space<vmem>>, vector<1x512xf32>
    %6 = tpu.transpose %5, [1, 0] : vector<1x512xf32> -> vector<512x1xf32>
    %c0_4 = arith.constant 0 : index
    %c0_5 = arith.constant 0 : index
    %7 = vector.load %arg4[%c0_4, %c0_5] : memref<1x256xf32, #tpu.memory_space<vmem>>, vector<1x256xf32>
    %8 = vector.broadcast %4 : vector<512x1xf32> to vector<512x256xf32>
    %9 = vector.broadcast %7 : vector<1x256xf32> to vector<512x256xf32>
    %10 = arith.cmpf oge, %8, %9 : vector<512x256xf32>
    %cst = arith.constant 0.000000e+00 : f32
    %11 = vector.shape_cast %6 : vector<512x1xf32> to vector<512x1xf32>
    %12 = vector.broadcast %11 : vector<512x1xf32> to vector<512x256xf32>
    %13 = vector.broadcast %cst : f32 to vector<512x256xf32>
    %14 = arith.select %10, %12, %13 : vector<512x256xi1>, vector<512x256xf32>
    %c0_6 = arith.constant 0 : index
    %c0_7 = arith.constant 0 : index
    %15 = vector.load %arg7[%c0_6, %c0_7] : memref<1x256xf32, #tpu.memory_space<vmem>>, vector<1x256xf32>
    %cst_8 = arith.constant dense<0.000000e+00> : vector<256xf32>
    %16 = vector.multi_reduction <add>, %14, %cst_8 [0] : vector<512x256xf32> to vector<256xf32>
    %17 = vector.shape_cast %16 : vector<256xf32> to vector<1x256xf32>
    %18 = arith.addf %15, %17 : vector<1x256xf32>
    %c0_9 = arith.constant 0 : index
    %c0_10 = arith.constant 0 : index
    %19 = vector.load %arg7[%c0_9, %c0_10] : memref<1x256xf32, #tpu.memory_space<vmem>>, vector<1x256xf32>
    tpu.vector_store %arg7[%c0_9, %c0_10], %18 {strides = array<i32>} : memref<1x256xf32, #tpu.memory_space<vmem>>, vector<1x256xf32>,
    %c0_i32_11 = arith.constant 0 : i32
    %20 = arith.cmpi eq, %arg1, %c0_i32_11 : i32
    %21 = arith.extui %20 : i1 to i32
    %c0_i32_12 = arith.constant 0 : i32
    %22 = arith.cmpi ne, %21, %c0_i32_12 : i32
    scf.if %22 {
      %c0_13 = arith.constant 0 : index
      %c0_14 = arith.constant 0 : index
      %23 = vector.load %arg5[%c0_13, %c0_14] : memref<1x256xf32, #tpu.memory_space<vmem>>, vector<1x256xf32>
      %c0_15 = arith.constant 0 : index
      %c0_16 = arith.constant 0 : index
      %24 = vector.load %arg7[%c0_15, %c0_16] : memref<1x256xf32, #tpu.memory_space<vmem>>, vector<1x256xf32>
      %25 = math.log %24 : vector<1x256xf32>
      %26 = arith.subf %23, %25 : vector<1x256xf32>
      %c0_17 = arith.constant 0 : index
      %c0_18 = arith.constant 0 : index
      %27 = vector.load %arg6[%c0_17, %c0_18] : memref<1x256xf32, #tpu.memory_space<vmem>>, vector<1x256xf32>
      %28 = arith.mulf %26, %27 : vector<1x256xf32>
      %c0_19 = arith.constant 0 : index
      %c0_20 = arith.constant 0 : index
      %29 = vector.load %arg7[%c0_19, %c0_20] : memref<1x256xf32, #tpu.memory_space<vmem>>, vector<1x256xf32>
      tpu.vector_store %arg7[%c0_19, %c0_20], %28 {strides = array<i32>} : memref<1x256xf32, #tpu.memory_space<vmem>>, vector<1x256xf32>,
    } else {
    }
    return
  }
  func.func @transform_0(%arg0: i32, %arg1: i32) -> (i32, i32) {
    %c0_i32 = arith.constant 0 : i32
    %c0_i32_0 = arith.constant 0 : i32
    return %c0_i32, %arg1 : i32, i32
  }
  func.func @transform_1(%arg0: i32, %arg1: i32) -> (i32, i32) {
    %c0_i32 = arith.constant 0 : i32
    %c0_i32_0 = arith.constant 0 : i32
    return %c0_i32, %arg1 : i32, i32
  }
  func.func @transform_2(%arg0: i32, %arg1: i32) -> (i32, i32) {
    %c0_i32 = arith.constant 0 : i32
    %c0_i32_0 = arith.constant 0 : i32
    return %c0_i32, %arg0 : i32, i32
  }
  func.func @transform_3(%arg0: i32, %arg1: i32) -> (i32, i32) {
    %c0_i32 = arith.constant 0 : i32
    %c0_i32_0 = arith.constant 0 : i32
    return %c0_i32, %arg0 : i32, i32
  }
  func.func @transform_4(%arg0: i32, %arg1: i32) -> (i32, i32) {
    %c0_i32 = arith.constant 0 : i32
    %c0_i32_0 = arith.constant 0 : i32
    return %c0_i32, %arg0 : i32, i32
  }
  func.func @transform_5(%arg0: i32, %arg1: i32) -> (i32, i32) {
    %c0_i32 = arith.constant 0 : i32
    %c0_i32_0 = arith.constant 0 : i32
    return %c0_i32, %arg0 : i32, i32
  }
}

</mosaic_0001>

<llo_original>
// kernel: tpu_custom_call.1
$region0: #{tpu_custom_call.1}
  #allocation0 [shape = 'u32[]', space=smem, size = 0x4, offset = 0x4, fixed_abs, tag = 'smem constant byte address 0x4 - core index']
  #allocation1 [shape = 'u32[144,128]{1,0:T(1,128)}', space=vmem, size = 0x12000, scoped, tag = 'internal scratch']
  %s0 = inlined_call_operand.hbm [shape: f32[1,512], index: 0, kind: input, shape index: {}]
  %s1 = inlined_call_operand.hbm [shape: f32[1,512], index: 1, kind: input, shape index: {}]
  %s2 = inlined_call_operand.vmem [shape: f32[1,512], index: 2, kind: input, shape index: {}]
  %s3 = inlined_call_operand.vmem [shape: f32[1,512], index: 3, kind: input, shape index: {}]
  %s4 = inlined_call_operand.vmem [shape: f32[1,512], index: 4, kind: input, shape index: {}]
  %s5 = inlined_call_operand.hbm [shape: f32[1,512], index: 5, kind: output, shape index: {}]
  %s6 = sld [smem:[#allocation0]]
  $region69: #{tpu_custom_call.1} parent=0
    _
  %s8 = ssub.s32 1, %s6
  %s9 = scalar_select 0, %s8, %s6
  $region1: #{tpu_custom_call.1} parent=0
    #allocation2 [shape = 'u8[2048]{0}', space=vmem, size = 0x800, scoped, tag = 'input window, operand 0, single buffered']
    #allocation3 [shape = 's32[2]{0}', space=sflag, size = 0x8, scoped, tag = 'scoped memory for tpu_custom_call.1']
    #allocation4 [shape = 's32[2]{0}', space=sflag, size = 0x8, scoped, tag = 'scoped memory for tpu_custom_call.1']
    #allocation5 [shape = 'u8[2048]{0}', space=vmem, size = 0x800, scoped, tag = 'input window, operand 1, single buffered']
    #allocation6 [shape = 's32[1]{0}', space=sflag, size = 0x4, scoped, tag = 'scoped memory for tpu_custom_call.1']
    #allocation7 [shape = 'u8[2048]{0}', space=vmem, size = 0x800, scoped, tag = 'output window, operand 0']
    %10 = vsyncpa [#allocation3], 0
    %11 = vsyncpa [#allocation6], 0
    %12 = vsyncpa [#allocation4], 0
    %s13 = scalar_lea.sflag [#allocation4], 1
    %14 = vsyncpa %s13, 0
    loop: start=0, step=1, limit=4
    $region2: #{tpu_custom_call.1} parent=1 // loop_pre_header
      _
    $region3: #{tpu_custom_call.1} parent=1 // loop_header
      %s16 = sphi 0, %s20
      %p17 = scmp.ge.s32.totalorder %s16, 4
      %s23 = sphi 0, %s35
      %s24 = sphi 0, %s31
      %s25 = sphi 0, %s23
      %s26 = sphi 0, %s24
      %s27 = sphi 0, %s25
      %s28 = sphi 0, %s26
      %s38 = sphi 0, %s40
      %s41 = sphi 0, %s38
      %s42 = sphi 0, %s41
      %s58 = sphi 0, %s42
      %s64 = sphi 0, %s66
      %s67 = sphi 0, %s64
      %s68 = sphi 0, %s67
      %s84 = sphi 0, %s68
      %s90 = sphi 0, %s92
      %s93 = sphi 0, %s90
      %s94 = sphi 0, %s93
      %s110 = sphi 0, %s94
      %s116 = sphi 0, %s118
      %s119 = sphi 0, %s116
      %s120 = sphi 0, %s119
      %s136 = sphi 0, %s120
      %s142 = sphi 0, %s144
      %s145 = sphi 0, %s142
      %s146 = sphi 0, %s145
      %s162 = sphi 0, %s146
      %s168 = sphi 0, %s170
      %s171 = sphi 0, %s168
      %s172 = sphi 0, %s171
      %s188 = sphi 0, %s172
    $region4: #{tpu_custom_call.1} parent=1 // loop_header_branch
      %19 = sbr.rel (%p17) target = $region8
    $region5: #{tpu_custom_call.1} parent=1 // loop_body
      %s21 = ssub.s32 %s16, 1
      %s22 = ssub.s32 %s16, 2
      %s29 = sadd.s32 1, %s24
      %p30 = scmp.ge.s32.totalorder %s29, 1
      %s31 = scalar_select %p30, 0, %s29
      %s32 = sadd.s32 1, %s23
      %s33 = scalar_select %p30, %s32, %s23
      %p34 = scmp.ge.s32.totalorder %s33, 2
      %s35 = scalar_select %p34, 0, %s33
      %s36 = ssub.s32 %s24, %s31
      %p37 = scmp.eq.s32.totalorder %s36, 0
      %s39 = sadd.s32 %s38, 1
      %s40 = scalar_select %p37, %s38, %s39
      %p43 = pneg %p37
      %p44 = scmp.eq.s32.totalorder %s16, 1
      %p45 = por %p43, %p44
      %p46 = scmp.ne.s32.totalorder %s38, %s41
      %p47 = scmp.eq.s32.totalorder %s16, 0
      %p48 = por %p46, %p47
      %p49 = scmp.ne.s32.totalorder %s38, %s41
      %p50 = scmp.eq.s32.totalorder %s21, 1
      %p51 = por %p49, %p50
      %p52 = scmp.ne.s32.totalorder %s41, %s42
      %p53 = scmp.eq.s32.totalorder %s21, 0
      %p54 = por %p52, %p53
      %p55 = scmp.ne.s32.totalorder %s41, %s42
      %p56 = scmp.eq.s32.totalorder %s22, 1
      %p57 = por %p55, %p56
      %p59 = scmp.ne.s32.totalorder %s42, %s58
      %p60 = scmp.eq.s32.totalorder %s22, 0
      %p61 = por %p59, %p60
      %s62 = ssub.s32 %s24, %s31
      %p63 = scmp.eq.s32.totalorder %s62, 0
      %s65 = sadd.s32 %s64, 1
      %s66 = scalar_select %p63, %s64, %s65
      %p69 = pneg %p63
      %p70 = scmp.eq.s32.totalorder %s16, 1
      %p71 = por %p69, %p70
      %p72 = scmp.ne.s32.totalorder %s64, %s67
      %p73 = scmp.eq.s32.totalorder %s16, 0
      %p74 = por %p72, %p73
      %p75 = scmp.ne.s32.totalorder %s64, %s67
      %p76 = scmp.eq.s32.totalorder %s21, 1
      %p77 = por %p75, %p76
      %p78 = scmp.ne.s32.totalorder %s67, %s68
      %p79 = scmp.eq.s32.totalorder %s21, 0
      %p80 = por %p78, %p79
      %p81 = scmp.ne.s32.totalorder %s67, %s68
      %p82 = scmp.eq.s32.totalorder %s22, 1
      %p83 = por %p81, %p82
      %p85 = scmp.ne.s32.totalorder %s68, %s84
      %p86 = scmp.eq.s32.totalorder %s22, 0
      %p87 = por %p85, %p86
      %s88 = ssub.s32 %s23, %s35
      %p89 = scmp.eq.s32.totalorder %s88, 0
      %s91 = sadd.s32 %s90, 1
      %s92 = scalar_select %p89, %s90, %s91
      %p95 = pneg %p89
      %p96 = scmp.eq.s32.totalorder %s16, 1
      %p97 = por %p95, %p96
      %p98 = scmp.ne.s32.totalorder %s90, %s93
      %p99 = scmp.eq.s32.totalorder %s16, 0
      %p100 = por %p98, %p99
      %p101 = scmp.ne.s32.totalorder %s90, %s93
      %p102 = scmp.eq.s32.totalorder %s21, 1
      %p103 = por %p101, %p102
      %p104 = scmp.ne.s32.totalorder %s93, %s94
      %p105 = scmp.eq.s32.totalorder %s21, 0
      %p106 = por %p104, %p105
      %p107 = scmp.ne.s32.totalorder %s93, %s94
      %p108 = scmp.eq.s32.totalorder %s22, 1
      %p109 = por %p107, %p108
      %p111 = scmp.ne.s32.totalorder %s94, %s110
      %p112 = scmp.eq.s32.totalorder %s22, 0
      %p113 = por %p111, %p112
      %s114 = ssub.s32 %s23, %s35
      %p115 = scmp.eq.s32.totalorder %s114, 0
      %s117 = sadd.s32 %s116, 1
      %s118 = scalar_select %p115, %s116, %s117
      %p121 = pneg %p115
      %p122 = scmp.eq.s32.totalorder %s16, 1
      %p123 = por %p121, %p122
      %p124 = scmp.ne.s32.totalorder %s116, %s119
      %p125 = scmp.eq.s32.totalorder %s16, 0
      %p126 = por %p124, %p125
      %p127 = scmp.ne.s32.totalorder %s116, %s119
      %p128 = scmp.eq.s32.totalorder %s21, 1
      %p129 = por %p127, %p128
      %p130 = scmp.ne.s32.totalorder %s119, %s120
      %p131 = scmp.eq.s32.totalorder %s21, 0
      %p132 = por %p130, %p131
      %p133 = scmp.ne.s32.totalorder %s119, %s120
      %p134 = scmp.eq.s32.totalorder %s22, 1
      %p135 = por %p133, %p134
      %p137 = scmp.ne.s32.totalorder %s120, %s136
      %p138 = scmp.eq.s32.totalorder %s22, 0
      %p139 = por %p137, %p138
      %s140 = ssub.s32 %s23, %s35
      %p141 = scmp.eq.s32.totalorder %s140, 0
      %s143 = sadd.s32 %s142, 1
      %s144 = scalar_select %p141, %s142, %s143
      %p147 = pneg %p141
      %p148 = scmp.eq.s32.totalorder %s16, 1
      %p149 = por %p147, %p148
      %p150 = scmp.ne.s32.totalorder %s142, %s145
      %p151 = scmp.eq.s32.totalorder %s16, 0
      %p152 = por %p150, %p151
      %p153 = scmp.ne.s32.totalorder %s142, %s145
      %p154 = scmp.eq.s32.totalorder %s21, 1
      %p155 = por %p153, %p154
      %p156 = scmp.ne.s32.totalorder %s145, %s146
      %p157 = scmp.eq.s32.totalorder %s21, 0
      %p158 = por %p156, %p157
      %p159 = scmp.ne.s32.totalorder %s145, %s146
      %p160 = scmp.eq.s32.totalorder %s22, 1
      %p161 = por %p159, %p160
      %p163 = scmp.ne.s32.totalorder %s146, %s162
      %p164 = scmp.eq.s32.totalorder %s22, 0
      %p165 = por %p163, %p164
      %s166 = ssub.s32 %s23, %s35
      %p167 = scmp.eq.s32.totalorder %s166, 0
      %s169 = sadd.s32 %s168, 1
      %s170 = scalar_select %p167, %s168, %s169
      %p173 = pneg %p167
      %p174 = scmp.eq.s32.totalorder %s16, 1
      %p175 = por %p173, %p174
      %p176 = scmp.ne.s32.totalorder %s168, %s171
      %p177 = scmp.eq.s32.totalorder %s16, 0
      %p178 = por %p176, %p177
      %p179 = scmp.ne.s32.totalorder %s168, %s171
      %p180 = scmp.eq.s32.totalorder %s21, 1
      %p181 = por %p179, %p180
      %p182 = scmp.ne.s32.totalorder %s171, %s172
      %p183 = scmp.eq.s32.totalorder %s21, 0
      %p184 = por %p182, %p183
      %p185 = scmp.ne.s32.totalorder %s171, %s172
      %p186 = scmp.eq.s32.totalorder %s22, 1
      %p187 = por %p185, %p186
      %p189 = scmp.ne.s32.totalorder %s172, %s188
      %p190 = scmp.eq.s32.totalorder %s22, 0
      %p191 = por %p189, %p190
      %p192 = scmp.le.s32.totalorder 1, %s16
      %p193 = scmp.lt.s32.totalorder %s16, 3
      %p194 = pnand %p192, %p193
      %p195 = pneg %p194
      // Predicated region
      $region9: #{tpu_custom_call.1} parent=5 // pred_check
        _
      $region10: #{tpu_custom_call.1} parent=5 // pred_check_branch
        %197 = sbr.rel (%p194) target = $region12
      $region11: #{tpu_custom_call.1} parent=5 // pred_region
        %s198 = ssub.s32 %s16, 1
        // Predicated region
        $region13: #{tpu_custom_call.1} parent=11 // pred_check
          %p199 = pneg %p54
        $region14: #{tpu_custom_call.1} parent=11 // pred_check_branch
          %201 = sbr.rel (%p199) target = $region16
        $region15: #{tpu_custom_call.1} parent=11 // pred_region
          %s202 = smul.u32 4, %s26
          %s204 = ssub.s32 64, 64
          %205 = vsyncadd [#allocation3], %s204
          %s206 = smul.addr %s202, 16
          %s207 = scalar_lea.hbm %s0, %s206
          %s209 = sshll.u32 [#allocation2], 4
          %s210 = int_to_ptr.vmem [resolvable:$true] %s209
          %212 = dma.hbm_to_vmem [thread:$0]  %s207, 64, %s210, [#allocation3]
        $region16: #{tpu_custom_call.1} parent=11 // pred_fallthru
          _
        // Predicated region
        $region17: #{tpu_custom_call.1} parent=11 // pred_check
          %p213 = pneg %p80
        $region18: #{tpu_custom_call.1} parent=11 // pred_check_branch
          %215 = sbr.rel (%p213) target = $region20
        $region19: #{tpu_custom_call.1} parent=11 // pred_region
          %s216 = smul.u32 4, %s26
          %s218 = ssub.s32 64, 64
          %219 = vsyncadd [#allocation6], %s218
          %s220 = smul.addr %s216, 16
          %s221 = scalar_lea.hbm %s1, %s220
          %s223 = sshll.u32 [#allocation5], 4
          %s224 = int_to_ptr.vmem [resolvable:$true] %s223
          %226 = dma.hbm_to_vmem [thread:$0]  %s221, 64, %s224, [#allocation6]
        $region20: #{tpu_custom_call.1} parent=11 // pred_fallthru
          _
      $region12: #{tpu_custom_call.1} parent=5 // pred_fallthru
        _
      %p227 = scmp.lt.s32.totalorder %s16, 2
      // Predicated region
      $region21: #{tpu_custom_call.1} parent=5 // pred_check
        %p228 = pneg %p227
      $region22: #{tpu_custom_call.1} parent=5 // pred_check_branch
        %230 = sbr.rel (%p228) target = $region24
      $region23: #{tpu_custom_call.1} parent=5 // pred_region
        // Predicated region
        $region25: #{tpu_custom_call.1} parent=23 // pred_check
          %p231 = pneg %p100
        $region26: #{tpu_custom_call.1} parent=23 // pred_check_branch
          %233 = sbr.rel (%p231) target = $region28
        $region27: #{tpu_custom_call.1} parent=23 // pred_region
          %s234 = smul.u32 2, %s23
          %p235 = scmp.lt.s32.totalorder %s234, 3
          %s236 = scalar_select %p235, %s234, 3
          %s237 = scalar_lea.vmem %s2, %s236
          %s238 = smul.u32 2, %s23
        $region28: #{tpu_custom_call.1} parent=23 // pred_fallthru
          _
        // Predicated region
        $region29: #{tpu_custom_call.1} parent=23 // pred_check
          %p239 = pneg %p126
        $region30: #{tpu_custom_call.1} parent=23 // pred_check_branch
          %241 = sbr.rel (%p239) target = $region32
        $region31: #{tpu_custom_call.1} parent=23 // pred_region
          %s242 = smul.u32 2, %s23
          %p243 = scmp.lt.s32.totalorder %s242, 3
          %s244 = scalar_select %p243, %s242, 3
          %s245 = scalar_lea.vmem %s3, %s244
          %s246 = smul.u32 2, %s23
        $region32: #{tpu_custom_call.1} parent=23 // pred_fallthru
          _
        // Predicated region
        $region33: #{tpu_custom_call.1} parent=23 // pred_check
          %p247 = pneg %p152
        $region34: #{tpu_custom_call.1} parent=23 // pred_check_branch
          %249 = sbr.rel (%p247) target = $region36
        $region35: #{tpu_custom_call.1} parent=23 // pred_region
          %s250 = smul.u32 2, %s23
          %p251 = scmp.lt.s32.totalorder %s250, 3
          %s252 = scalar_select %p251, %s250, 3
          %s253 = scalar_lea.vmem %s4, %s252
          %s254 = smul.u32 2, %s23
        $region36: #{tpu_custom_call.1} parent=23 // pred_fallthru
          _
      $region24: #{tpu_custom_call.1} parent=5 // pred_fallthru
        _
      %p255 = scmp.le.s32.totalorder 1, %s16
      %p256 = scmp.lt.s32.totalorder %s16, 3
      %p257 = pnand %p255, %p256
      %p258 = pneg %p257
      // Predicated region
      $region37: #{tpu_custom_call.1} parent=5 // pred_check
        _
      $region38: #{tpu_custom_call.1} parent=5 // pred_check_branch
        %260 = sbr.rel (%p257) target = $region40
      $region39: #{tpu_custom_call.1} parent=5 // pred_region
        %s261 = ssub.s32 %s16, 1
        // Predicated region
        $region41: #{tpu_custom_call.1} parent=39 // pred_check
          %p262 = pneg %p54
        $region42: #{tpu_custom_call.1} parent=39 // pred_check_branch
          %264 = sbr.rel (%p262) target = $region44
        $region43: #{tpu_custom_call.1} parent=39 // pred_region
          %265 = dma.done [#allocation3], 64
        $region44: #{tpu_custom_call.1} parent=39 // pred_fallthru
          _
        // Predicated region
        $region45: #{tpu_custom_call.1} parent=39 // pred_check
          %p266 = pneg %p80
        $region46: #{tpu_custom_call.1} parent=39 // pred_check_branch
          %268 = sbr.rel (%p266) target = $region48
        $region47: #{tpu_custom_call.1} parent=39 // pred_region
          %269 = dma.done [#allocation6], 64
        $region48: #{tpu_custom_call.1} parent=39 // pred_fallthru
          _
        %p270 = pneg %p54
        %p271 = pneg %p51
        %p272 = pneg %p80
        %p273 = pneg %p77
        %s274 = smul.u32 2, %s25
        %p275 = scmp.lt.s32.totalorder %s274, 3
        %s276 = scalar_select %p275, %s274, 3
        %s277 = scalar_lea.vmem %s2, %s276
        %p278 = pneg %p106
        %p279 = pneg %p103
        %s280 = smul.u32 2, %s25
        %p281 = scmp.lt.s32.totalorder %s280, 3
        %s282 = scalar_select %p281, %s280, 3
        %s283 = scalar_lea.vmem %s3, %s282
        %p284 = pneg %p132
        %p285 = pneg %p129
        %s286 = smul.u32 2, %s25
        %p287 = scmp.lt.s32.totalorder %s286, 3
        %s288 = scalar_select %p287, %s286, 3
        %s289 = scalar_lea.vmem %s4, %s288
        %p290 = pneg %p158
        %p291 = pneg %p155
        %p292 = pneg %p184
        %p293 = pneg %p181
        %s294 = sand.u32 %s171, 1
        %s295 = scalar_lea.sflag [#allocation4], %s294
        %s296 = sand.u32 %s171, 1
        %s297 = smul.addr %s296, 2
        %s298 = scalar_lea.vmem [#allocation7], %s297
        %s299 = smul.u32 4, %s26
        %s300 = smul.u32 4, %s26
        %s301 = smul.u32 2, %s25
        %p302 = scmp.lt.s32.totalorder %s301, 3
        %s303 = scalar_select %p302, %s301, 3
        %s304 = scalar_lea.vmem %s2, %s303
        %s305 = smul.u32 2, %s25
        %s306 = smul.u32 2, %s25
        %p307 = scmp.lt.s32.totalorder %s306, 3
        %s308 = scalar_select %p307, %s306, 3
        %s309 = scalar_lea.vmem %s3, %s308
        %s310 = smul.u32 2, %s25
        %s311 = smul.u32 2, %s25
        %p312 = scmp.lt.s32.totalorder %s311, 3
        %s313 = scalar_select %p312, %s311, 3
        %s314 = scalar_lea.vmem %s4, %s313
        %s315 = smul.u32 2, %s25
        %s316 = smul.u32 2, %s25
        %p317 = scmp.eq.s32.totalorder %s26, 0
        // Predicated region
        $region49: #{tpu_custom_call.1} parent=39 // pred_check
          %p318 = pneg %p317
        $region50: #{tpu_custom_call.1} parent=39 // pred_check_branch
          %320 = sbr.rel (%p318) target = $region52
        $region51: #{tpu_custom_call.1} parent=39 // pred_region
          %v321 = vlaneseq
          %vm322 = vcmp.ge.s32.totalorder %v321, 0
          %vm323 = vcmp.lt.s32.totalorder %v321, 256
          %vm324 = vmand %vm322, %vm323
          %325 = vst.msk [vmem:[%s298] sm:$0x3] %vm324, 0.0
        $region52: #{tpu_custom_call.1} parent=39 // pred_fallthru
          _
        %v326 = vld [vmem:[#allocation2] sm:$0xf]
        %v328 = vlaneseq
        %v329 = vshrl.u32 %v328, 7
        %v330 = vsub.s32 0, %v329
        %v331 = vrot.slane %v326, %v330
        %v332 = vlaneseq
        %v333 = vshrl.u32 %v332, 7
        %v334 = vsub.s32 1, %v333
        %v335 = vrot.slane %v326, %v334
        %v336 = vlaneseq
        %v337 = vshrl.u32 %v336, 7
        %v338 = vsub.s32 2, %v337
        %v339 = vrot.slane %v326, %v338
        %v340 = vlaneseq
        %v341 = vshrl.u32 %v340, 7
        %v342 = vsub.s32 3, %v341
        %v343 = vrot.slane %v326, %v342
        %348 = vxpose.xlu0.b32.start [1/16] %v331, 128
        %349 = vxpose.xlu0.b32.cont [2/16] 0.0, 128
        %350 = vxpose.xlu0.b32.cont [3/16] 0.0, 128
        %351 = vxpose.xlu0.b32.cont [4/16] 0.0, 128
        %352 = vxpose.xlu0.b32.cont [5/16] 0.0, 128
        %353 = vxpose.xlu0.b32.cont [6/16] 0.0, 128
        %354 = vxpose.xlu0.b32.cont [7/16] 0.0, 128
        %355 = vxpose.xlu0.b32.cont [8/16] 0.0, 128
        %356 = vxpose.xlu0.b32.cont [9/16] 0.0, 128
        %357 = vxpose.xlu0.b32.cont [10/16] 0.0, 128
        %358 = vxpose.xlu0.b32.cont [11/16] 0.0, 128
        %359 = vxpose.xlu0.b32.cont [12/16] 0.0, 128
        %360 = vxpose.xlu0.b32.cont [13/16] 0.0, 128
        %361 = vxpose.xlu0.b32.cont [14/16] 0.0, 128
        %362 = vxpose.xlu0.b32.cont [15/16] 0.0, 128
        %363 = vxpose.xlu0.b32.end [16/16] 0.0, 128
        %v364 = vpop.trf.xlu0
        %v365 = vpop.trf.xlu0
        %v366 = vpop.trf.xlu0
        %v367 = vpop.trf.xlu0
        %v368 = vpop.trf.xlu0
        %v369 = vpop.trf.xlu0
        %v370 = vpop.trf.xlu0
        %v371 = vpop.trf.xlu0
        %v372 = vpop.trf.xlu0
        %v373 = vpop.trf.xlu0
        %v374 = vpop.trf.xlu0
        %v375 = vpop.trf.xlu0
        %v376 = vpop.trf.xlu0
        %v377 = vpop.trf.xlu0
        %v378 = vpop.trf.xlu0
        %v379 = vpop.trf.xlu0
        %380 = vxpose.xlu0.b32.start [1/16] %v335, 128
        %381 = vxpose.xlu0.b32.cont [2/16] 0.0, 128
        %382 = vxpose.xlu0.b32.cont [3/16] 0.0, 128
        %383 = vxpose.xlu0.b32.cont [4/16] 0.0, 128
        %384 = vxpose.xlu0.b32.cont [5/16] 0.0, 128
        %385 = vxpose.xlu0.b32.cont [6/16] 0.0, 128
        %386 = vxpose.xlu0.b32.cont [7/16] 0.0, 128
        %387 = vxpose.xlu0.b32.cont [8/16] 0.0, 128
        %388 = vxpose.xlu0.b32.cont [9/16] 0.0, 128
        %389 = vxpose.xlu0.b32.cont [10/16] 0.0, 128
        %390 = vxpose.xlu0.b32.cont [11/16] 0.0, 128
        %391 = vxpose.xlu0.b32.cont [12/16] 0.0, 128
        %392 = vxpose.xlu0.b32.cont [13/16] 0.0, 128
        %393 = vxpose.xlu0.b32.cont [14/16] 0.0, 128
        %394 = vxpose.xlu0.b32.cont [15/16] 0.0, 128
        %395 = vxpose.xlu0.b32.end [16/16] 0.0, 128
        %v396 = vpop.trf.xlu0
        %v397 = vpop.trf.xlu0
        %v398 = vpop.trf.xlu0
        %v399 = vpop.trf.xlu0
        %v400 = vpop.trf.xlu0
        %v401 = vpop.trf.xlu0
        %v402 = vpop.trf.xlu0
        %v403 = vpop.trf.xlu0
        %v404 = vpop.trf.xlu0
        %v405 = vpop.trf.xlu0
        %v406 = vpop.trf.xlu0
        %v407 = vpop.trf.xlu0
        %v408 = vpop.trf.xlu0
        %v409 = vpop.trf.xlu0
        %v410 = vpop.trf.xlu0
        %v411 = vpop.trf.xlu0
        %412 = vxpose.xlu0.b32.start [1/16] %v339, 128
        %413 = vxpose.xlu0.b32.cont [2/16] 0.0, 128
        %414 = vxpose.xlu0.b32.cont [3/16] 0.0, 128
        %415 = vxpose.xlu0.b32.cont [4/16] 0.0, 128
        %416 = vxpose.xlu0.b32.cont [5/16] 0.0, 128
        %417 = vxpose.xlu0.b32.cont [6/16] 0.0, 128
        %418 = vxpose.xlu0.b32.cont [7/16] 0.0, 128
        %419 = vxpose.xlu0.b32.cont [8/16] 0.0, 128
        %420 = vxpose.xlu0.b32.cont [9/16] 0.0, 128
        %421 = vxpose.xlu0.b32.cont [10/16] 0.0, 128
        %422 = vxpose.xlu0.b32.cont [11/16] 0.0, 128
        %423 = vxpose.xlu0.b32.cont [12/16] 0.0, 128
        %424 = vxpose.xlu0.b32.cont [13/16] 0.0, 128
        %425 = vxpose.xlu0.b32.cont [14/16] 0.0, 128
        %426 = vxpose.xlu0.b32.cont [15/16] 0.0, 128
        %427 = vxpose.xlu0.b32.end [16/16] 0.0, 128
        %v428 = vpop.trf.xlu0
        %v429 = vpop.trf.xlu0
        %v430 = vpop.trf.xlu0
        %v431 = vpop.trf.xlu0
        %v432 = vpop.trf.xlu0
        %v433 = vpop.trf.xlu0
        %v434 = vpop.trf.xlu0
        %v435 = vpop.trf.xlu0
        %v436 = vpop.trf.xlu0
        %v437 = vpop.trf.xlu0
        %v438 = vpop.trf.xlu0
        %v439 = vpop.trf.xlu0
        %v440 = vpop.trf.xlu0
        %v441 = vpop.trf.xlu0
        %v442 = vpop.trf.xlu0
        %v443 = vpop.trf.xlu0
        %444 = vxpose.xlu0.b32.start [1/16] %v343, 128
        %445 = vxpose.xlu0.b32.cont [2/16] 0.0, 128
        %446 = vxpose.xlu0.b32.cont [3/16] 0.0, 128
        %447 = vxpose.xlu0.b32.cont [4/16] 0.0, 128
        %448 = vxpose.xlu0.b32.cont [5/16] 0.0, 128
        %449 = vxpose.xlu0.b32.cont [6/16] 0.0, 128
        %450 = vxpose.xlu0.b32.cont [7/16] 0.0, 128
        %451 = vxpose.xlu0.b32.cont [8/16] 0.0, 128
        %452 = vxpose.xlu0.b32.cont [9/16] 0.0, 128
        %453 = vxpose.xlu0.b32.cont [10/16] 0.0, 128
        %454 = vxpose.xlu0.b32.cont [11/16] 0.0, 128
        %455 = vxpose.xlu0.b32.cont [12/16] 0.0, 128
        %456 = vxpose.xlu0.b32.cont [13/16] 0.0, 128
        %457 = vxpose.xlu0.b32.cont [14/16] 0.0, 128
        %458 = vxpose.xlu0.b32.cont [15/16] 0.0, 128
        %459 = vxpose.xlu0.b32.end [16/16] 0.0, 128
        %v460 = vpop.trf.xlu0
        %v461 = vpop.trf.xlu0
        %v462 = vpop.trf.xlu0
        %v463 = vpop.trf.xlu0
        %v464 = vpop.trf.xlu0
        %v465 = vpop.trf.xlu0
        %v466 = vpop.trf.xlu0
        %v467 = vpop.trf.xlu0
        %v468 = vpop.trf.xlu0
        %v469 = vpop.trf.xlu0
        %v470 = vpop.trf.xlu0
        %v471 = vpop.trf.xlu0
        %v472 = vpop.trf.xlu0
        %v473 = vpop.trf.xlu0
        %v474 = vpop.trf.xlu0
        %v475 = vpop.trf.xlu0
        %v476 = vld [vmem:[#allocation5] sm:$0xf]
        %v478 = vlaneseq
        %v479 = vshrl.u32 %v478, 7
        %v480 = vsub.s32 0, %v479
        %v481 = vrot.slane %v476, %v480
        %v482 = vlaneseq
        %v483 = vshrl.u32 %v482, 7
        %v484 = vsub.s32 1, %v483
        %v485 = vrot.slane %v476, %v484
        %v486 = vlaneseq
        %v487 = vshrl.u32 %v486, 7
        %v488 = vsub.s32 2, %v487
        %v489 = vrot.slane %v476, %v488
        %v490 = vlaneseq
        %v491 = vshrl.u32 %v490, 7
        %v492 = vsub.s32 3, %v491
        %v493 = vrot.slane %v476, %v492
        %498 = vxpose.xlu0.b32.start [1/16] %v481, 128
        %499 = vxpose.xlu0.b32.cont [2/16] 0.0, 128
        %500 = vxpose.xlu0.b32.cont [3/16] 0.0, 128
        %501 = vxpose.xlu0.b32.cont [4/16] 0.0, 128
        %502 = vxpose.xlu0.b32.cont [5/16] 0.0, 128
        %503 = vxpose.xlu0.b32.cont [6/16] 0.0, 128
        %504 = vxpose.xlu0.b32.cont [7/16] 0.0, 128
        %505 = vxpose.xlu0.b32.cont [8/16] 0.0, 128
        %506 = vxpose.xlu0.b32.cont [9/16] 0.0, 128
        %507 = vxpose.xlu0.b32.cont [10/16] 0.0, 128
        %508 = vxpose.xlu0.b32.cont [11/16] 0.0, 128
        %509 = vxpose.xlu0.b32.cont [12/16] 0.0, 128
        %510 = vxpose.xlu0.b32.cont [13/16] 0.0, 128
        %511 = vxpose.xlu0.b32.cont [14/16] 0.0, 128
        %512 = vxpose.xlu0.b32.cont [15/16] 0.0, 128
        %513 = vxpose.xlu0.b32.end [16/16] 0.0, 128
        %v514 = vpop.trf.xlu0
        %v515 = vpop.trf.xlu0
        %v516 = vpop.trf.xlu0
        %v517 = vpop.trf.xlu0
        %v518 = vpop.trf.xlu0
        %v519 = vpop.trf.xlu0
        %v520 = vpop.trf.xlu0
        %v521 = vpop.trf.xlu0
        %v522 = vpop.trf.xlu0
        %v523 = vpop.trf.xlu0
        %v524 = vpop.trf.xlu0
        %v525 = vpop.trf.xlu0
        %v526 = vpop.trf.xlu0
        %v527 = vpop.trf.xlu0
        %v528 = vpop.trf.xlu0
        %v529 = vpop.trf.xlu0
        %530 = vxpose.xlu0.b32.start [1/16] %v485, 128
        %531 = vxpose.xlu0.b32.cont [2/16] 0.0, 128
        %532 = vxpose.xlu0.b32.cont [3/16] 0.0, 128
        %533 = vxpose.xlu0.b32.cont [4/16] 0.0, 128
        %534 = vxpose.xlu0.b32.cont [5/16] 0.0, 128
        %535 = vxpose.xlu0.b32.cont [6/16] 0.0, 128
        %536 = vxpose.xlu0.b32.cont [7/16] 0.0, 128
        %537 = vxpose.xlu0.b32.cont [8/16] 0.0, 128
        %538 = vxpose.xlu0.b32.cont [9/16] 0.0, 128
        %539 = vxpose.xlu0.b32.cont [10/16] 0.0, 128
        %540 = vxpose.xlu0.b32.cont [11/16] 0.0, 128
        %541 = vxpose.xlu0.b32.cont [12/16] 0.0, 128
        %542 = vxpose.xlu0.b32.cont [13/16] 0.0, 128
        %543 = vxpose.xlu0.b32.cont [14/16] 0.0, 128
        %544 = vxpose.xlu0.b32.cont [15/16] 0.0, 128
        %545 = vxpose.xlu0.b32.end [16/16] 0.0, 128
        %v546 = vpop.trf.xlu0
        %v547 = vpop.trf.xlu0
        %v548 = vpop.trf.xlu0
        %v549 = vpop.trf.xlu0
        %v550 = vpop.trf.xlu0
        %v551 = vpop.trf.xlu0
        %v552 = vpop.trf.xlu0
        %v553 = vpop.trf.xlu0
        %v554 = vpop.trf.xlu0
        %v555 = vpop.trf.xlu0
        %v556 = vpop.trf.xlu0
        %v557 = vpop.trf.xlu0
        %v558 = vpop.trf.xlu0
        %v559 = vpop.trf.xlu0
        %v560 = vpop.trf.xlu0
        %v561 = vpop.trf.xlu0
        %562 = vxpose.xlu0.b32.start [1/16] %v489, 128
        %563 = vxpose.xlu0.b32.cont [2/16] 0.0, 128
        %564 = vxpose.xlu0.b32.cont [3/16] 0.0, 128
        %565 = vxpose.xlu0.b32.cont [4/16] 0.0, 128
        %566 = vxpose.xlu0.b32.cont [5/16] 0.0, 128
        %567 = vxpose.xlu0.b32.cont [6/16] 0.0, 128
        %568 = vxpose.xlu0.b32.cont [7/16] 0.0, 128
        %569 = vxpose.xlu0.b32.cont [8/16] 0.0, 128
        %570 = vxpose.xlu0.b32.cont [9/16] 0.0, 128
        %571 = vxpose.xlu0.b32.cont [10/16] 0.0, 128
        %572 = vxpose.xlu0.b32.cont [11/16] 0.0, 128
        %573 = vxpose.xlu0.b32.cont [12/16] 0.0, 128
        %574 = vxpose.xlu0.b32.cont [13/16] 0.0, 128
        %575 = vxpose.xlu0.b32.cont [14/16] 0.0, 128
        %576 = vxpose.xlu0.b32.cont [15/16] 0.0, 128
        %577 = vxpose.xlu0.b32.end [16/16] 0.0, 128
        %v578 = vpop.trf.xlu0
        %v579 = vpop.trf.xlu0
        %v580 = vpop.trf.xlu0
        %v581 = vpop.trf.xlu0
        %v582 = vpop.trf.xlu0
        %v583 = vpop.trf.xlu0
        %v584 = vpop.trf.xlu0
        %v585 = vpop.trf.xlu0
        %v586 = vpop.trf.xlu0
        %v587 = vpop.trf.xlu0
        %v588 = vpop.trf.xlu0
        %v589 = vpop.trf.xlu0
        %v590 = vpop.trf.xlu0
        %v591 = vpop.trf.xlu0
        %v592 = vpop.trf.xlu0
        %v593 = vpop.trf.xlu0
        %594 = vxpose.xlu0.b32.start [1/16] %v493, 128
        %595 = vxpose.xlu0.b32.cont [2/16] 0.0, 128
        %596 = vxpose.xlu0.b32.cont [3/16] 0.0, 128
        %597 = vxpose.xlu0.b32.cont [4/16] 0.0, 128
        %598 = vxpose.xlu0.b32.cont [5/16] 0.0, 128
        %599 = vxpose.xlu0.b32.cont [6/16] 0.0, 128
        %600 = vxpose.xlu0.b32.cont [7/16] 0.0, 128
        %601 = vxpose.xlu0.b32.cont [8/16] 0.0, 128
        %602 = vxpose.xlu0.b32.cont [9/16] 0.0, 128
        %603 = vxpose.xlu0.b32.cont [10/16] 0.0, 128
        %604 = vxpose.xlu0.b32.cont [11/16] 0.0, 128
        %605 = vxpose.xlu0.b32.cont [12/16] 0.0, 128
        %606 = vxpose.xlu0.b32.cont [13/16] 0.0, 128
        %607 = vxpose.xlu0.b32.cont [14/16] 0.0, 128
        %608 = vxpose.xlu0.b32.cont [15/16] 0.0, 128
        %609 = vxpose.xlu0.b32.end [16/16] 0.0, 128
        %v610 = vpop.trf.xlu0
        %v611 = vpop.trf.xlu0
        %v612 = vpop.trf.xlu0
        %v613 = vpop.trf.xlu0
        %v614 = vpop.trf.xlu0
        %v615 = vpop.trf.xlu0
        %v616 = vpop.trf.xlu0
        %v617 = vpop.trf.xlu0
        %v618 = vpop.trf.xlu0
        %v619 = vpop.trf.xlu0
        %v620 = vpop.trf.xlu0
        %v621 = vpop.trf.xlu0
        %v622 = vpop.trf.xlu0
        %v623 = vpop.trf.xlu0
        %v624 = vpop.trf.xlu0
        %v625 = vpop.trf.xlu0
        %v626 = vld [vmem:[%s304] sm:$0x3]
        %628 = vset.pattern.permute.xlu0 0
        %629 = vperm.xlu0 %628, %v364
        %v630 = vpop.permute.xlu0 %629
        %633 = vset.pattern.permute.xlu0 0
        %634 = vperm.xlu0 %633, %v365
        %v635 = vpop.permute.xlu0 %634
        %638 = vset.pattern.permute.xlu0 0
        %639 = vperm.xlu0 %638, %v366
        %v640 = vpop.permute.xlu0 %639
        %643 = vset.pattern.permute.xlu0 0
        %644 = vperm.xlu0 %643, %v367
        %v645 = vpop.permute.xlu0 %644
        %648 = vset.pattern.permute.xlu0 0
        %649 = vperm.xlu0 %648, %v368
        %v650 = vpop.permute.xlu0 %649
        %653 = vset.pattern.permute.xlu0 0
        %654 = vperm.xlu0 %653, %v369
        %v655 = vpop.permute.xlu0 %654
        %658 = vset.pattern.permute.xlu0 0
        %659 = vperm.xlu0 %658, %v370
        %v660 = vpop.permute.xlu0 %659
        %663 = vset.pattern.permute.xlu0 0
        %664 = vperm.xlu0 %663, %v371
        %v665 = vpop.permute.xlu0 %664
        %668 = vset.pattern.permute.xlu0 0
        %669 = vperm.xlu0 %668, %v372
        %v670 = vpop.permute.xlu0 %669
        %673 = vset.pattern.permute.xlu0 0
        %674 = vperm.xlu0 %673, %v373
        %v675 = vpop.permute.xlu0 %674
        %678 = vset.pattern.permute.xlu0 0
        %679 = vperm.xlu0 %678, %v374
        %v680 = vpop.permute.xlu0 %679
        %683 = vset.pattern.permute.xlu0 0
        %684 = vperm.xlu0 %683, %v375
        %v685 = vpop.permute.xlu0 %684
        %688 = vset.pattern.permute.xlu0 0
        %689 = vperm.xlu0 %688, %v376
        %v690 = vpop.permute.xlu0 %689
        %693 = vset.pattern.permute.xlu0 0
        %694 = vperm.xlu0 %693, %v377
        %v695 = vpop.permute.xlu0 %694
        %698 = vset.pattern.permute.xlu0 0
        %699 = vperm.xlu0 %698, %v378
        %v700 = vpop.permute.xlu0 %699
        %703 = vset.pattern.permute.xlu0 0
        %704 = vperm.xlu0 %703, %v379
        %v705 = vpop.permute.xlu0 %704
        %708 = vset.pattern.permute.xlu0 0
        %709 = vperm.xlu0 %708, %v396
        %v710 = vpop.permute.xlu0 %709
        %713 = vset.pattern.permute.xlu0 0
        %714 = vperm.xlu0 %713, %v397
        %v715 = vpop.permute.xlu0 %714
        %718 = vset.pattern.permute.xlu0 0
        %719 = vperm.xlu0 %718, %v398
        %v720 = vpop.permute.xlu0 %719
        %723 = vset.pattern.permute.xlu0 0
        %724 = vperm.xlu0 %723, %v399
        %v725 = vpop.permute.xlu0 %724
        %728 = vset.pattern.permute.xlu0 0
        %729 = vperm.xlu0 %728, %v400
        %v730 = vpop.permute.xlu0 %729
        %733 = vset.pattern.permute.xlu0 0
        %734 = vperm.xlu0 %733, %v401
        %v735 = vpop.permute.xlu0 %734
        %738 = vset.pattern.permute.xlu0 0
        %739 = vperm.xlu0 %738, %v402
        %v740 = vpop.permute.xlu0 %739
        %743 = vset.pattern.permute.xlu0 0
        %744 = vperm.xlu0 %743, %v403
        %v745 = vpop.permute.xlu0 %744
        %748 = vset.pattern.permute.xlu0 0
        %749 = vperm.xlu0 %748, %v404
        %v750 = vpop.permute.xlu0 %749
        %753 = vset.pattern.permute.xlu0 0
        %754 = vperm.xlu0 %753, %v405
        %v755 = vpop.permute.xlu0 %754
        %758 = vset.pattern.permute.xlu0 0
        %759 = vperm.xlu0 %758, %v406
        %v760 = vpop.permute.xlu0 %759
        %763 = vset.pattern.permute.xlu0 0
        %764 = vperm.xlu0 %763, %v407
        %v765 = vpop.permute.xlu0 %764
        %768 = vset.pattern.permute.xlu0 0
        %769 = vperm.xlu0 %768, %v408
        %v770 = vpop.permute.xlu0 %769
        %773 = vset.pattern.permute.xlu0 0
        %774 = vperm.xlu0 %773, %v409
        %v775 = vpop.permute.xlu0 %774
        %778 = vset.pattern.permute.xlu0 0
        %779 = vperm.xlu0 %778, %v410
        %v780 = vpop.permute.xlu0 %779
        %783 = vset.pattern.permute.xlu0 0
        %784 = vperm.xlu0 %783, %v411
        %v785 = vpop.permute.xlu0 %784
        %788 = vset.pattern.permute.xlu0 0
        %789 = vperm.xlu0 %788, %v428
        %v790 = vpop.permute.xlu0 %789
        %793 = vset.pattern.permute.xlu0 0
        %794 = vperm.xlu0 %793, %v429
        %v795 = vpop.permute.xlu0 %794
        %798 = vset.pattern.permute.xlu0 0
        %799 = vperm.xlu0 %798, %v430
        %v800 = vpop.permute.xlu0 %799
        %803 = vset.pattern.permute.xlu0 0
        %804 = vperm.xlu0 %803, %v431
        %v805 = vpop.permute.xlu0 %804
        %808 = vset.pattern.permute.xlu0 0
        %809 = vperm.xlu0 %808, %v432
        %v810 = vpop.permute.xlu0 %809
        %813 = vset.pattern.permute.xlu0 0
        %814 = vperm.xlu0 %813, %v433
        %v815 = vpop.permute.xlu0 %814
        %818 = vset.pattern.permute.xlu0 0
        %819 = vperm.xlu0 %818, %v434
        %v820 = vpop.permute.xlu0 %819
        %823 = vset.pattern.permute.xlu0 0
        %824 = vperm.xlu0 %823, %v435
        %v825 = vpop.permute.xlu0 %824
        %828 = vset.pattern.permute.xlu0 0
        %829 = vperm.xlu0 %828, %v436
        %v830 = vpop.permute.xlu0 %829
        %833 = vset.pattern.permute.xlu0 0
        %834 = vperm.xlu0 %833, %v437
        %v835 = vpop.permute.xlu0 %834
        %838 = vset.pattern.permute.xlu0 0
        %839 = vperm.xlu0 %838, %v438
        %v840 = vpop.permute.xlu0 %839
        %843 = vset.pattern.permute.xlu0 0
        %844 = vperm.xlu0 %843, %v439
        %v845 = vpop.permute.xlu0 %844
        %848 = vset.pattern.permute.xlu0 0
        %849 = vperm.xlu0 %848, %v440
        %v850 = vpop.permute.xlu0 %849
        %853 = vset.pattern.permute.xlu0 0
        %854 = vperm.xlu0 %853, %v441
        %v855 = vpop.permute.xlu0 %854
        %858 = vset.pattern.permute.xlu0 0
        %859 = vperm.xlu0 %858, %v442
        %v860 = vpop.permute.xlu0 %859
        %863 = vset.pattern.permute.xlu0 0
        %864 = vperm.xlu0 %863, %v443
        %v865 = vpop.permute.xlu0 %864
        %868 = vset.pattern.permute.xlu0 0
        %869 = vperm.xlu0 %868, %v460
        %v870 = vpop.permute.xlu0 %869
        %873 = vset.pattern.permute.xlu0 0
        %874 = vperm.xlu0 %873, %v461
        %v875 = vpop.permute.xlu0 %874
        %878 = vset.pattern.permute.xlu0 0
        %879 = vperm.xlu0 %878, %v462
        %v880 = vpop.permute.xlu0 %879
        %883 = vset.pattern.permute.xlu0 0
        %884 = vperm.xlu0 %883, %v463
        %v885 = vpop.permute.xlu0 %884
        %888 = vset.pattern.permute.xlu0 0
        %889 = vperm.xlu0 %888, %v464
        %v890 = vpop.permute.xlu0 %889
        %893 = vset.pattern.permute.xlu0 0
        %894 = vperm.xlu0 %893, %v465
        %v895 = vpop.permute.xlu0 %894
        %898 = vset.pattern.permute.xlu0 0
        %899 = vperm.xlu0 %898, %v466
        %v900 = vpop.permute.xlu0 %899
        %903 = vset.pattern.permute.xlu0 0
        %904 = vperm.xlu0 %903, %v467
        %v905 = vpop.permute.xlu0 %904
        %908 = vset.pattern.permute.xlu0 0
        %909 = vperm.xlu0 %908, %v468
        %v910 = vpop.permute.xlu0 %909
        %913 = vset.pattern.permute.xlu0 0
        %914 = vperm.xlu0 %913, %v469
        %v915 = vpop.permute.xlu0 %914
        %918 = vset.pattern.permute.xlu0 0
        %919 = vperm.xlu0 %918, %v470
        %v920 = vpop.permute.xlu0 %919
        %923 = vset.pattern.permute.xlu0 0
        %924 = vperm.xlu0 %923, %v471
        %v925 = vpop.permute.xlu0 %924
        %928 = vset.pattern.permute.xlu0 0
        %929 = vperm.xlu0 %928, %v472
        %v930 = vpop.permute.xlu0 %929
        %933 = vset.pattern.permute.xlu0 0
        %934 = vperm.xlu0 %933, %v473
        %v935 = vpop.permute.xlu0 %934
        %938 = vset.pattern.permute.xlu0 0
        %939 = vperm.xlu0 %938, %v474
        %v940 = vpop.permute.xlu0 %939
        %943 = vset.pattern.permute.xlu0 0
        %944 = vperm.xlu0 %943, %v475
        %v945 = vpop.permute.xlu0 %944
        %v948 = vlaneseq
        %v949 = vshrl.u32 %v948, 7
        %v950 = vsub.s32 0, %v949
        %v951 = vrot.slane %v626, %v950
        %v952 = vlaneseq
        %v953 = vshrl.u32 %v952, 7
        %v954 = vsub.s32 1, %v953
        %v955 = vrot.slane %v626, %v954
        %vm958 = vcmp.ge.f32.partialorder %v630, %v951
        %vm959 = vcmp.ge.f32.partialorder %v630, %v955
        %vm960 = vcmp.ge.f32.partialorder %v635, %v951
        %vm961 = vcmp.ge.f32.partialorder %v635, %v955
        %vm962 = vcmp.ge.f32.partialorder %v640, %v951
        %vm963 = vcmp.ge.f32.partialorder %v640, %v955
        %vm964 = vcmp.ge.f32.partialorder %v645, %v951
        %vm965 = vcmp.ge.f32.partialorder %v645, %v955
        %vm966 = vcmp.ge.f32.partialorder %v650, %v951
        %vm967 = vcmp.ge.f32.partialorder %v650, %v955
        %vm968 = vcmp.ge.f32.partialorder %v655, %v951
        %vm969 = vcmp.ge.f32.partialorder %v655, %v955
        %vm970 = vcmp.ge.f32.partialorder %v660, %v951
        %vm971 = vcmp.ge.f32.partialorder %v660, %v955
        %vm972 = vcmp.ge.f32.partialorder %v665, %v951
        %vm973 = vcmp.ge.f32.partialorder %v665, %v955
        %vm974 = vcmp.ge.f32.partialorder %v670, %v951
        %vm975 = vcmp.ge.f32.partialorder %v670, %v955
        %vm976 = vcmp.ge.f32.partialorder %v675, %v951
        %vm977 = vcmp.ge.f32.partialorder %v675, %v955
        %vm978 = vcmp.ge.f32.partialorder %v680, %v951
        %vm979 = vcmp.ge.f32.partialorder %v680, %v955
        %vm980 = vcmp.ge.f32.partialorder %v685, %v951
        %vm981 = vcmp.ge.f32.partialorder %v685, %v955
        %vm982 = vcmp.ge.f32.partialorder %v690, %v951
        %vm983 = vcmp.ge.f32.partialorder %v690, %v955
        %vm984 = vcmp.ge.f32.partialorder %v695, %v951
        %vm985 = vcmp.ge.f32.partialorder %v695, %v955
        %vm986 = vcmp.ge.f32.partialorder %v700, %v951
        %vm987 = vcmp.ge.f32.partialorder %v700, %v955
        %vm988 = vcmp.ge.f32.partialorder %v705, %v951
        %vm989 = vcmp.ge.f32.partialorder %v705, %v955
        %vm990 = vcmp.ge.f32.partialorder %v710, %v951
        %vm991 = vcmp.ge.f32.partialorder %v710, %v955
        %vm992 = vcmp.ge.f32.partialorder %v715, %v951
        %vm993 = vcmp.ge.f32.partialorder %v715, %v955
        %vm994 = vcmp.ge.f32.partialorder %v720, %v951
        %vm995 = vcmp.ge.f32.partialorder %v720, %v955
        %vm996 = vcmp.ge.f32.partialorder %v725, %v951
        %vm997 = vcmp.ge.f32.partialorder %v725, %v955
        %vm998 = vcmp.ge.f32.partialorder %v730, %v951
        %vm999 = vcmp.ge.f32.partialorder %v730, %v955
        %vm1000 = vcmp.ge.f32.partialorder %v735, %v951
        %vm1001 = vcmp.ge.f32.partialorder %v735, %v955
        %vm1002 = vcmp.ge.f32.partialorder %v740, %v951
        %vm1003 = vcmp.ge.f32.partialorder %v740, %v955
        %vm1004 = vcmp.ge.f32.partialorder %v745, %v951
        %vm1005 = vcmp.ge.f32.partialorder %v745, %v955
        %vm1006 = vcmp.ge.f32.partialorder %v750, %v951
        %vm1007 = vcmp.ge.f32.partialorder %v750, %v955
        %vm1008 = vcmp.ge.f32.partialorder %v755, %v951
        %vm1009 = vcmp.ge.f32.partialorder %v755, %v955
        %vm1010 = vcmp.ge.f32.partialorder %v760, %v951
        %vm1011 = vcmp.ge.f32.partialorder %v760, %v955
        %vm1012 = vcmp.ge.f32.partialorder %v765, %v951
        %vm1013 = vcmp.ge.f32.partialorder %v765, %v955
        %vm1014 = vcmp.ge.f32.partialorder %v770, %v951
        %vm1015 = vcmp.ge.f32.partialorder %v770, %v955
        %vm1016 = vcmp.ge.f32.partialorder %v775, %v951
        %vm1017 = vcmp.ge.f32.partialorder %v775, %v955
        %vm1018 = vcmp.ge.f32.partialorder %v780, %v951
        %vm1019 = vcmp.ge.f32.partialorder %v780, %v955
        %vm1020 = vcmp.ge.f32.partialorder %v785, %v951
        %vm1021 = vcmp.ge.f32.partialorder %v785, %v955
        %vm1022 = vcmp.ge.f32.partialorder %v790, %v951
        %vm1023 = vcmp.ge.f32.partialorder %v790, %v955
        %vm1024 = vcmp.ge.f32.partialorder %v795, %v951
        %vm1025 = vcmp.ge.f32.partialorder %v795, %v955
        %vm1026 = vcmp.ge.f32.partialorder %v800, %v951
        %vm1027 = vcmp.ge.f32.partialorder %v800, %v955
        %vm1028 = vcmp.ge.f32.partialorder %v805, %v951
        %vm1029 = vcmp.ge.f32.partialorder %v805, %v955
        %vm1030 = vcmp.ge.f32.partialorder %v810, %v951
        %vm1031 = vcmp.ge.f32.partialorder %v810, %v955
        %vm1032 = vcmp.ge.f32.partialorder %v815, %v951
        %vm1033 = vcmp.ge.f32.partialorder %v815, %v955
        %vm1034 = vcmp.ge.f32.partialorder %v820, %v951
        %vm1035 = vcmp.ge.f32.partialorder %v820, %v955
        %vm1036 = vcmp.ge.f32.partialorder %v825, %v951
        %vm1037 = vcmp.ge.f32.partialorder %v825, %v955
        %vm1038 = vcmp.ge.f32.partialorder %v830, %v951
        %vm1039 = vcmp.ge.f32.partialorder %v830, %v955
        %vm1040 = vcmp.ge.f32.partialorder %v835, %v951
        %vm1041 = vcmp.ge.f32.partialorder %v835, %v955
        %vm1042 = vcmp.ge.f32.partialorder %v840, %v951
        %vm1043 = vcmp.ge.f32.partialorder %v840, %v955
        %vm1044 = vcmp.ge.f32.partialorder %v845, %v951
        %vm1045 = vcmp.ge.f32.partialorder %v845, %v955
        %vm1046 = vcmp.ge.f32.partialorder %v850, %v951
        %vm1047 = vcmp.ge.f32.partialorder %v850, %v955
        %vm1048 = vcmp.ge.f32.partialorder %v855, %v951
        %vm1049 = vcmp.ge.f32.partialorder %v855, %v955
        %vm1050 = vcmp.ge.f32.partialorder %v860, %v951
        %vm1051 = vcmp.ge.f32.partialorder %v860, %v955
        %vm1052 = vcmp.ge.f32.partialorder %v865, %v951
        %vm1053 = vcmp.ge.f32.partialorder %v865, %v955
        %vm1054 = vcmp.ge.f32.partialorder %v870, %v951
        %vm1055 = vcmp.ge.f32.partialorder %v870, %v955
        %vm1056 = vcmp.ge.f32.partialorder %v875, %v951
        %vm1057 = vcmp.ge.f32.partialorder %v875, %v955
        %vm1058 = vcmp.ge.f32.partialorder %v880, %v951
        %vm1059 = vcmp.ge.f32.partialorder %v880, %v955
        %vm1060 = vcmp.ge.f32.partialorder %v885, %v951
        %vm1061 = vcmp.ge.f32.partialorder %v885, %v955
        %vm1062 = vcmp.ge.f32.partialorder %v890, %v951
        %vm1063 = vcmp.ge.f32.partialorder %v890, %v955
        %vm1064 = vcmp.ge.f32.partialorder %v895, %v951
        %vm1065 = vcmp.ge.f32.partialorder %v895, %v955
        %vm1066 = vcmp.ge.f32.partialorder %v900, %v951
        %vm1067 = vcmp.ge.f32.partialorder %v900, %v955
        %vm1068 = vcmp.ge.f32.partialorder %v905, %v951
        %vm1069 = vcmp.ge.f32.partialorder %v905, %v955
        %vm1070 = vcmp.ge.f32.partialorder %v910, %v951
        %vm1071 = vcmp.ge.f32.partialorder %v910, %v955
        %vm1072 = vcmp.ge.f32.partialorder %v915, %v951
        %vm1073 = vcmp.ge.f32.partialorder %v915, %v955
        %vm1074 = vcmp.ge.f32.partialorder %v920, %v951
        %vm1075 = vcmp.ge.f32.partialorder %v920, %v955
        %vm1076 = vcmp.ge.f32.partialorder %v925, %v951
        %vm1077 = vcmp.ge.f32.partialorder %v925, %v955
        %vm1078 = vcmp.ge.f32.partialorder %v930, %v951
        %vm1079 = vcmp.ge.f32.partialorder %v930, %v955
        %vm1080 = vcmp.ge.f32.partialorder %v935, %v951
        %vm1081 = vcmp.ge.f32.partialorder %v935, %v955
        %vm1082 = vcmp.ge.f32.partialorder %v940, %v951
        %vm1083 = vcmp.ge.f32.partialorder %v940, %v955
        %vm1084 = vcmp.ge.f32.partialorder %v945, %v951
        %vm1085 = vcmp.ge.f32.partialorder %v945, %v955
        %1087 = vset.pattern.permute.xlu0 0
        %1088 = vperm.xlu0 %1087, %v514
        %v1089 = vpop.permute.xlu0 %1088
        %1092 = vset.pattern.permute.xlu0 0
        %1093 = vperm.xlu0 %1092, %v515
        %v1094 = vpop.permute.xlu0 %1093
        %1097 = vset.pattern.permute.xlu0 0
        %1098 = vperm.xlu0 %1097, %v516
        %v1099 = vpop.permute.xlu0 %1098
        %1102 = vset.pattern.permute.xlu0 0
        %1103 = vperm.xlu0 %1102, %v517
        %v1104 = vpop.permute.xlu0 %1103
        %1107 = vset.pattern.permute.xlu0 0
        %1108 = vperm.xlu0 %1107, %v518
        %v1109 = vpop.permute.xlu0 %1108
        %1112 = vset.pattern.permute.xlu0 0
        %1113 = vperm.xlu0 %1112, %v519
        %v1114 = vpop.permute.xlu0 %1113
        %1117 = vset.pattern.permute.xlu0 0
        %1118 = vperm.xlu0 %1117, %v520
        %v1119 = vpop.permute.xlu0 %1118
        %1122 = vset.pattern.permute.xlu0 0
        %1123 = vperm.xlu0 %1122, %v521
        %v1124 = vpop.permute.xlu0 %1123
        %1127 = vset.pattern.permute.xlu0 0
        %1128 = vperm.xlu0 %1127, %v522
        %v1129 = vpop.permute.xlu0 %1128
        %1132 = vset.pattern.permute.xlu0 0
        %1133 = vperm.xlu0 %1132, %v523
        %v1134 = vpop.permute.xlu0 %1133
        %1137 = vset.pattern.permute.xlu0 0
        %1138 = vperm.xlu0 %1137, %v524
        %v1139 = vpop.permute.xlu0 %1138
        %1142 = vset.pattern.permute.xlu0 0
        %1143 = vperm.xlu0 %1142, %v525
        %v1144 = vpop.permute.xlu0 %1143
        %1147 = vset.pattern.permute.xlu0 0
        %1148 = vperm.xlu0 %1147, %v526
        %v1149 = vpop.permute.xlu0 %1148
        %1152 = vset.pattern.permute.xlu0 0
        %1153 = vperm.xlu0 %1152, %v527
        %v1154 = vpop.permute.xlu0 %1153
        %1157 = vset.pattern.permute.xlu0 0
        %1158 = vperm.xlu0 %1157, %v528
        %v1159 = vpop.permute.xlu0 %1158
        %1162 = vset.pattern.permute.xlu0 0
        %1163 = vperm.xlu0 %1162, %v529
        %v1164 = vpop.permute.xlu0 %1163
        %1167 = vset.pattern.permute.xlu0 0
        %1168 = vperm.xlu0 %1167, %v546
        %v1169 = vpop.permute.xlu0 %1168
        %1172 = vset.pattern.permute.xlu0 0
        %1173 = vperm.xlu0 %1172, %v547
        %v1174 = vpop.permute.xlu0 %1173
        %1177 = vset.pattern.permute.xlu0 0
        %1178 = vperm.xlu0 %1177, %v548
        %v1179 = vpop.permute.xlu0 %1178
        %1182 = vset.pattern.permute.xlu0 0
        %1183 = vperm.xlu0 %1182, %v549
        %v1184 = vpop.permute.xlu0 %1183
        %1187 = vset.pattern.permute.xlu0 0
        %1188 = vperm.xlu0 %1187, %v550
        %v1189 = vpop.permute.xlu0 %1188
        %1192 = vset.pattern.permute.xlu0 0
        %1193 = vperm.xlu0 %1192, %v551
        %v1194 = vpop.permute.xlu0 %1193
        %1197 = vset.pattern.permute.xlu0 0
        %1198 = vperm.xlu0 %1197, %v552
        %v1199 = vpop.permute.xlu0 %1198
        %1202 = vset.pattern.permute.xlu0 0
        %1203 = vperm.xlu0 %1202, %v553
        %v1204 = vpop.permute.xlu0 %1203
        %1207 = vset.pattern.permute.xlu0 0
        %1208 = vperm.xlu0 %1207, %v554
        %v1209 = vpop.permute.xlu0 %1208
        %1212 = vset.pattern.permute.xlu0 0
        %1213 = vperm.xlu0 %1212, %v555
        %v1214 = vpop.permute.xlu0 %1213
        %1217 = vset.pattern.permute.xlu0 0
        %1218 = vperm.xlu0 %1217, %v556
        %v1219 = vpop.permute.xlu0 %1218
        %1222 = vset.pattern.permute.xlu0 0
        %1223 = vperm.xlu0 %1222, %v557
        %v1224 = vpop.permute.xlu0 %1223
        %1227 = vset.pattern.permute.xlu0 0
        %1228 = vperm.xlu0 %1227, %v558
        %v1229 = vpop.permute.xlu0 %1228
        %1232 = vset.pattern.permute.xlu0 0
        %1233 = vperm.xlu0 %1232, %v559
        %v1234 = vpop.permute.xlu0 %1233
        %1237 = vset.pattern.permute.xlu0 0
        %1238 = vperm.xlu0 %1237, %v560
        %v1239 = vpop.permute.xlu0 %1238
        %1242 = vset.pattern.permute.xlu0 0
        %1243 = vperm.xlu0 %1242, %v561
        %v1244 = vpop.permute.xlu0 %1243
        %1247 = vset.pattern.permute.xlu0 0
        %1248 = vperm.xlu0 %1247, %v578
        %v1249 = vpop.permute.xlu0 %1248
        %1252 = vset.pattern.permute.xlu0 0
        %1253 = vperm.xlu0 %1252, %v579
        %v1254 = vpop.permute.xlu0 %1253
        %1257 = vset.pattern.permute.xlu0 0
        %1258 = vperm.xlu0 %1257, %v580
        %v1259 = vpop.permute.xlu0 %1258
        %1262 = vset.pattern.permute.xlu0 0
        %1263 = vperm.xlu0 %1262, %v581
        %v1264 = vpop.permute.xlu0 %1263
        %1267 = vset.pattern.permute.xlu0 0
        %1268 = vperm.xlu0 %1267, %v582
        %v1269 = vpop.permute.xlu0 %1268
        %1272 = vset.pattern.permute.xlu0 0
        %1273 = vperm.xlu0 %1272, %v583
        %v1274 = vpop.permute.xlu0 %1273
        %1277 = vset.pattern.permute.xlu0 0
        %1278 = vperm.xlu0 %1277, %v584
        %v1279 = vpop.permute.xlu0 %1278
        %1282 = vset.pattern.permute.xlu0 0
        %1283 = vperm.xlu0 %1282, %v585
        %v1284 = vpop.permute.xlu0 %1283
        %1287 = vset.pattern.permute.xlu0 0
        %1288 = vperm.xlu0 %1287, %v586
        %v1289 = vpop.permute.xlu0 %1288
        %1292 = vset.pattern.permute.xlu0 0
        %1293 = vperm.xlu0 %1292, %v587
        %v1294 = vpop.permute.xlu0 %1293
        %1297 = vset.pattern.permute.xlu0 0
        %1298 = vperm.xlu0 %1297, %v588
        %v1299 = vpop.permute.xlu0 %1298
        %1302 = vset.pattern.permute.xlu0 0
        %1303 = vperm.xlu0 %1302, %v589
        %v1304 = vpop.permute.xlu0 %1303
        %1307 = vset.pattern.permute.xlu0 0
        %1308 = vperm.xlu0 %1307, %v590
        %v1309 = vpop.permute.xlu0 %1308
        %1312 = vset.pattern.permute.xlu0 0
        %1313 = vperm.xlu0 %1312, %v591
        %v1314 = vpop.permute.xlu0 %1313
        %1317 = vset.pattern.permute.xlu0 0
        %1318 = vperm.xlu0 %1317, %v592
        %v1319 = vpop.permute.xlu0 %1318
        %1322 = vset.pattern.permute.xlu0 0
        %1323 = vperm.xlu0 %1322, %v593
        %v1324 = vpop.permute.xlu0 %1323
        %1327 = vset.pattern.permute.xlu0 0
        %1328 = vperm.xlu0 %1327, %v610
        %v1329 = vpop.permute.xlu0 %1328
        %1332 = vset.pattern.permute.xlu0 0
        %1333 = vperm.xlu0 %1332, %v611
        %v1334 = vpop.permute.xlu0 %1333
        %1337 = vset.pattern.permute.xlu0 0
        %1338 = vperm.xlu0 %1337, %v612
        %v1339 = vpop.permute.xlu0 %1338
        %1342 = vset.pattern.permute.xlu0 0
        %1343 = vperm.xlu0 %1342, %v613
        %v1344 = vpop.permute.xlu0 %1343
        %1347 = vset.pattern.permute.xlu0 0
        %1348 = vperm.xlu0 %1347, %v614
        %v1349 = vpop.permute.xlu0 %1348
        %1352 = vset.pattern.permute.xlu0 0
        %1353 = vperm.xlu0 %1352, %v615
        %v1354 = vpop.permute.xlu0 %1353
        %1357 = vset.pattern.permute.xlu0 0
        %1358 = vperm.xlu0 %1357, %v616
        %v1359 = vpop.permute.xlu0 %1358
        %1362 = vset.pattern.permute.xlu0 0
        %1363 = vperm.xlu0 %1362, %v617
        %v1364 = vpop.permute.xlu0 %1363
        %1367 = vset.pattern.permute.xlu0 0
        %1368 = vperm.xlu0 %1367, %v618
        %v1369 = vpop.permute.xlu0 %1368
        %1372 = vset.pattern.permute.xlu0 0
        %1373 = vperm.xlu0 %1372, %v619
        %v1374 = vpop.permute.xlu0 %1373
        %1377 = vset.pattern.permute.xlu0 0
        %1378 = vperm.xlu0 %1377, %v620
        %v1379 = vpop.permute.xlu0 %1378
        %1382 = vset.pattern.permute.xlu0 0
        %1383 = vperm.xlu0 %1382, %v621
        %v1384 = vpop.permute.xlu0 %1383
        %1387 = vset.pattern.permute.xlu0 0
        %1388 = vperm.xlu0 %1387, %v622
        %v1389 = vpop.permute.xlu0 %1388
        %1392 = vset.pattern.permute.xlu0 0
        %1393 = vperm.xlu0 %1392, %v623
        %v1394 = vpop.permute.xlu0 %1393
        %1397 = vset.pattern.permute.xlu0 0
        %1398 = vperm.xlu0 %1397, %v624
        %v1399 = vpop.permute.xlu0 %1398
        %1402 = vset.pattern.permute.xlu0 0
        %1403 = vperm.xlu0 %1402, %v625
        %v1404 = vpop.permute.xlu0 %1403
        %v1406 = vsel %vm958, %v1089, 0.0
        %v1407 = vsel %vm959, %v1089, 0.0
        %v1408 = vsel %vm960, %v1094, 0.0
        %v1409 = vsel %vm961, %v1094, 0.0
        %v1410 = vsel %vm962, %v1099, 0.0
        %v1411 = vsel %vm963, %v1099, 0.0
        %v1412 = vsel %vm964, %v1104, 0.0
        %v1413 = vsel %vm965, %v1104, 0.0
        %v1414 = vsel %vm966, %v1109, 0.0
        %v1415 = vsel %vm967, %v1109, 0.0
        %v1416 = vsel %vm968, %v1114, 0.0
        %v1417 = vsel %vm969, %v1114, 0.0
        %v1418 = vsel %vm970, %v1119, 0.0
        %v1419 = vsel %vm971, %v1119, 0.0
        %v1420 = vsel %vm972, %v1124, 0.0
        %v1421 = vsel %vm973, %v1124, 0.0
        %v1422 = vsel %vm974, %v1129, 0.0
        %v1423 = vsel %vm975, %v1129, 0.0
        %v1424 = vsel %vm976, %v1134, 0.0
        %v1425 = vsel %vm977, %v1134, 0.0
        %v1426 = vsel %vm978, %v1139, 0.0
        %v1427 = vsel %vm979, %v1139, 0.0
        %v1428 = vsel %vm980, %v1144, 0.0
        %v1429 = vsel %vm981, %v1144, 0.0
        %v1430 = vsel %vm982, %v1149, 0.0
        %v1431 = vsel %vm983, %v1149, 0.0
        %v1432 = vsel %vm984, %v1154, 0.0
        %v1433 = vsel %vm985, %v1154, 0.0
        %v1434 = vsel %vm986, %v1159, 0.0
        %v1435 = vsel %vm987, %v1159, 0.0
        %v1436 = vsel %vm988, %v1164, 0.0
        %v1437 = vsel %vm989, %v1164, 0.0
        %v1438 = vsel %vm990, %v1169, 0.0
        %v1439 = vsel %vm991, %v1169, 0.0
        %v1440 = vsel %vm992, %v1174, 0.0
        %v1441 = vsel %vm993, %v1174, 0.0
        %v1442 = vsel %vm994, %v1179, 0.0
        %v1443 = vsel %vm995, %v1179, 0.0
        %v1444 = vsel %vm996, %v1184, 0.0
        %v1445 = vsel %vm997, %v1184, 0.0
        %v1446 = vsel %vm998, %v1189, 0.0
        %v1447 = vsel %vm999, %v1189, 0.0
        %v1448 = vsel %vm1000, %v1194, 0.0
        %v1449 = vsel %vm1001, %v1194, 0.0
        %v1450 = vsel %vm1002, %v1199, 0.0
        %v1451 = vsel %vm1003, %v1199, 0.0
        %v1452 = vsel %vm1004, %v1204, 0.0
        %v1453 = vsel %vm1005, %v1204, 0.0
        %v1454 = vsel %vm1006, %v1209, 0.0
        %v1455 = vsel %vm1007, %v1209, 0.0
        %v1456 = vsel %vm1008, %v1214, 0.0
        %v1457 = vsel %vm1009, %v1214, 0.0
        %v1458 = vsel %vm1010, %v1219, 0.0
        %v1459 = vsel %vm1011, %v1219, 0.0
        %v1460 = vsel %vm1012, %v1224, 0.0
        %v1461 = vsel %vm1013, %v1224, 0.0
        %v1462 = vsel %vm1014, %v1229, 0.0
        %v1463 = vsel %vm1015, %v1229, 0.0
        %v1464 = vsel %vm1016, %v1234, 0.0
        %v1465 = vsel %vm1017, %v1234, 0.0
        %v1466 = vsel %vm1018, %v1239, 0.0
        %v1467 = vsel %vm1019, %v1239, 0.0
        %v1468 = vsel %vm1020, %v1244, 0.0
        %v1469 = vsel %vm1021, %v1244, 0.0
        %v1470 = vsel %vm1022, %v1249, 0.0
        %v1471 = vsel %vm1023, %v1249, 0.0
        %v1472 = vsel %vm1024, %v1254, 0.0
        %v1473 = vsel %vm1025, %v1254, 0.0
        %v1474 = vsel %vm1026, %v1259, 0.0
        %v1475 = vsel %vm1027, %v1259, 0.0
        %v1476 = vsel %vm1028, %v1264, 0.0
        %v1477 = vsel %vm1029, %v1264, 0.0
        %v1478 = vsel %vm1030, %v1269, 0.0
        %v1479 = vsel %vm1031, %v1269, 0.0
        %v1480 = vsel %vm1032, %v1274, 0.0
        %v1481 = vsel %vm1033, %v1274, 0.0
        %v1482 = vsel %vm1034, %v1279, 0.0
        %v1483 = vsel %vm1035, %v1279, 0.0
        %v1484 = vsel %vm1036, %v1284, 0.0
        %v1485 = vsel %vm1037, %v1284, 0.0
        %v1486 = vsel %vm1038, %v1289, 0.0
        %v1487 = vsel %vm1039, %v1289, 0.0
        %v1488 = vsel %vm1040, %v1294, 0.0
        %v1489 = vsel %vm1041, %v1294, 0.0
        %v1490 = vsel %vm1042, %v1299, 0.0
        %v1491 = vsel %vm1043, %v1299, 0.0
        %v1492 = vsel %vm1044, %v1304, 0.0
        %v1493 = vsel %vm1045, %v1304, 0.0
        %v1494 = vsel %vm1046, %v1309, 0.0
        %v1495 = vsel %vm1047, %v1309, 0.0
        %v1496 = vsel %vm1048, %v1314, 0.0
        %v1497 = vsel %vm1049, %v1314, 0.0
        %v1498 = vsel %vm1050, %v1319, 0.0
        %v1499 = vsel %vm1051, %v1319, 0.0
        %v1500 = vsel %vm1052, %v1324, 0.0
        %v1501 = vsel %vm1053, %v1324, 0.0
        %v1502 = vsel %vm1054, %v1329, 0.0
        %v1503 = vsel %vm1055, %v1329, 0.0
        %v1504 = vsel %vm1056, %v1334, 0.0
        %v1505 = vsel %vm1057, %v1334, 0.0
        %v1506 = vsel %vm1058, %v1339, 0.0
        %v1507 = vsel %vm1059, %v1339, 0.0
        %v1508 = vsel %vm1060, %v1344, 0.0
        %v1509 = vsel %vm1061, %v1344, 0.0
        %v1510 = vsel %vm1062, %v1349, 0.0
        %v1511 = vsel %vm1063, %v1349, 0.0
        %v1512 = vsel %vm1064, %v1354, 0.0
        %v1513 = vsel %vm1065, %v1354, 0.0
        %v1514 = vsel %vm1066, %v1359, 0.0
        %v1515 = vsel %vm1067, %v1359, 0.0
        %v1516 = vsel %vm1068, %v1364, 0.0
        %v1517 = vsel %vm1069, %v1364, 0.0
        %v1518 = vsel %vm1070, %v1369, 0.0
        %v1519 = vsel %vm1071, %v1369, 0.0
        %v1520 = vsel %vm1072, %v1374, 0.0
        %v1521 = vsel %vm1073, %v1374, 0.0
        %v1522 = vsel %vm1074, %v1379, 0.0
        %v1523 = vsel %vm1075, %v1379, 0.0
        %v1524 = vsel %vm1076, %v1384, 0.0
        %v1525 = vsel %vm1077, %v1384, 0.0
        %v1526 = vsel %vm1078, %v1389, 0.0
        %v1527 = vsel %vm1079, %v1389, 0.0
        %v1528 = vsel %vm1080, %v1394, 0.0
        %v1529 = vsel %vm1081, %v1394, 0.0
        %v1530 = vsel %vm1082, %v1399, 0.0
        %v1531 = vsel %vm1083, %v1399, 0.0
        %v1532 = vsel %vm1084, %v1404, 0.0
        %v1533 = vsel %vm1085, %v1404, 0.0
        %v1534 = vld [vmem:[%s298] sm:$0x3]
        %v1535 = vadd.f32 %v1406, %v1408
        %v1536 = vadd.f32 %v1535, %v1410
        %v1537 = vadd.f32 %v1536, %v1412
        %v1538 = vadd.f32 %v1537, %v1414
        %v1539 = vadd.f32 %v1538, %v1416
        %v1540 = vadd.f32 %v1539, %v1418
        %v1541 = vadd.f32 %v1540, %v1420
        %v1542 = vadd.f32 %v1541, %v1422
        %v1543 = vadd.f32 %v1542, %v1424
        %v1544 = vadd.f32 %v1543, %v1426
        %v1545 = vadd.f32 %v1544, %v1428
        %v1546 = vadd.f32 %v1545, %v1430
        %v1547 = vadd.f32 %v1546, %v1432
        %v1548 = vadd.f32 %v1547, %v1434
        %v1549 = vadd.f32 %v1548, %v1436
        %v1550 = vadd.f32 %v1549, %v1438
        %v1551 = vadd.f32 %v1550, %v1440
        %v1552 = vadd.f32 %v1551, %v1442
        %v1553 = vadd.f32 %v1552, %v1444
        %v1554 = vadd.f32 %v1553, %v1446
        %v1555 = vadd.f32 %v1554, %v1448
        %v1556 = vadd.f32 %v1555, %v1450
        %v1557 = vadd.f32 %v1556, %v1452
        %v1558 = vadd.f32 %v1557, %v1454
        %v1559 = vadd.f32 %v1558, %v1456
        %v1560 = vadd.f32 %v1559, %v1458
        %v1561 = vadd.f32 %v1560, %v1460
        %v1562 = vadd.f32 %v1561, %v1462
        %v1563 = vadd.f32 %v1562, %v1464
        %v1564 = vadd.f32 %v1563, %v1466
        %v1565 = vadd.f32 %v1564, %v1468
        %v1566 = vadd.f32 %v1565, %v1470
        %v1567 = vadd.f32 %v1566, %v1472
        %v1568 = vadd.f32 %v1567, %v1474
        %v1569 = vadd.f32 %v1568, %v1476
        %v1570 = vadd.f32 %v1569, %v1478
        %v1571 = vadd.f32 %v1570, %v1480
        %v1572 = vadd.f32 %v1571, %v1482
        %v1573 = vadd.f32 %v1572, %v1484
        %v1574 = vadd.f32 %v1573, %v1486
        %v1575 = vadd.f32 %v1574, %v1488
        %v1576 = vadd.f32 %v1575, %v1490
        %v1577 = vadd.f32 %v1576, %v1492
        %v1578 = vadd.f32 %v1577, %v1494
        %v1579 = vadd.f32 %v1578, %v1496
        %v1580 = vadd.f32 %v1579, %v1498
        %v1581 = vadd.f32 %v1580, %v1500
        %v1582 = vadd.f32 %v1581, %v1502
        %v1583 = vadd.f32 %v1582, %v1504
        %v1584 = vadd.f32 %v1583, %v1506
        %v1585 = vadd.f32 %v1584, %v1508
        %v1586 = vadd.f32 %v1585, %v1510
        %v1587 = vadd.f32 %v1586, %v1512
        %v1588 = vadd.f32 %v1587, %v1514
        %v1589 = vadd.f32 %v1588, %v1516
        %v1590 = vadd.f32 %v1589, %v1518
        %v1591 = vadd.f32 %v1590, %v1520
        %v1592 = vadd.f32 %v1591, %v1522
        %v1593 = vadd.f32 %v1592, %v1524
        %v1594 = vadd.f32 %v1593, %v1526
        %v1595 = vadd.f32 %v1594, %v1528
        %v1596 = vadd.f32 %v1595, %v1530
        %v1597 = vadd.f32 %v1596, %v1532
        %v1598 = vrot.slane %v1597, 4
        %v1599 = vadd.f32 %v1597, %v1598
        %v1600 = vrot.slane %v1599, 2
        %v1601 = vadd.f32 %v1599, %v1600
        %v1602 = vrot.slane %v1601, 1
        %v1603 = vadd.f32 %v1601, %v1602
        %v1604 = vadd.f32 %v1407, %v1409
        %v1605 = vadd.f32 %v1604, %v1411
        %v1606 = vadd.f32 %v1605, %v1413
        %v1607 = vadd.f32 %v1606, %v1415
        %v1608 = vadd.f32 %v1607, %v1417
        %v1609 = vadd.f32 %v1608, %v1419
        %v1610 = vadd.f32 %v1609, %v1421
        %v1611 = vadd.f32 %v1610, %v1423
        %v1612 = vadd.f32 %v1611, %v1425
        %v1613 = vadd.f32 %v1612, %v1427
        %v1614 = vadd.f32 %v1613, %v1429
        %v1615 = vadd.f32 %v1614, %v1431
        %v1616 = vadd.f32 %v1615, %v1433
        %v1617 = vadd.f32 %v1616, %v1435
        %v1618 = vadd.f32 %v1617, %v1437
        %v1619 = vadd.f32 %v1618, %v1439
        %v1620 = vadd.f32 %v1619, %v1441
        %v1621 = vadd.f32 %v1620, %v1443
        %v1622 = vadd.f32 %v1621, %v1445
        %v1623 = vadd.f32 %v1622, %v1447
        %v1624 = vadd.f32 %v1623, %v1449
        %v1625 = vadd.f32 %v1624, %v1451
        %v1626 = vadd.f32 %v1625, %v1453
        %v1627 = vadd.f32 %v1626, %v1455
        %v1628 = vadd.f32 %v1627, %v1457
        %v1629 = vadd.f32 %v1628, %v1459
        %v1630 = vadd.f32 %v1629, %v1461
        %v1631 = vadd.f32 %v1630, %v1463
        %v1632 = vadd.f32 %v1631, %v1465
        %v1633 = vadd.f32 %v1632, %v1467
        %v1634 = vadd.f32 %v1633, %v1469
        %v1635 = vadd.f32 %v1634, %v1471
        %v1636 = vadd.f32 %v1635, %v1473
        %v1637 = vadd.f32 %v1636, %v1475
        %v1638 = vadd.f32 %v1637, %v1477
        %v1639 = vadd.f32 %v1638, %v1479
        %v1640 = vadd.f32 %v1639, %v1481
        %v1641 = vadd.f32 %v1640, %v1483
        %v1642 = vadd.f32 %v1641, %v1485
        %v1643 = vadd.f32 %v1642, %v1487
        %v1644 = vadd.f32 %v1643, %v1489
        %v1645 = vadd.f32 %v1644, %v1491
        %v1646 = vadd.f32 %v1645, %v1493
        %v1647 = vadd.f32 %v1646, %v1495
        %v1648 = vadd.f32 %v1647, %v1497
        %v1649 = vadd.f32 %v1648, %v1499
        %v1650 = vadd.f32 %v1649, %v1501
        %v1651 = vadd.f32 %v1650, %v1503
        %v1652 = vadd.f32 %v1651, %v1505
        %v1653 = vadd.f32 %v1652, %v1507
        %v1654 = vadd.f32 %v1653, %v1509
        %v1655 = vadd.f32 %v1654, %v1511
        %v1656 = vadd.f32 %v1655, %v1513
        %v1657 = vadd.f32 %v1656, %v1515
        %v1658 = vadd.f32 %v1657, %v1517
        %v1659 = vadd.f32 %v1658, %v1519
        %v1660 = vadd.f32 %v1659, %v1521
        %v1661 = vadd.f32 %v1660, %v1523
        %v1662 = vadd.f32 %v1661, %v1525
        %v1663 = vadd.f32 %v1662, %v1527
        %v1664 = vadd.f32 %v1663, %v1529
        %v1665 = vadd.f32 %v1664, %v1531
        %v1666 = vadd.f32 %v1665, %v1533
        %v1667 = vrot.slane %v1666, 4
        %v1668 = vadd.f32 %v1666, %v1667
        %v1669 = vrot.slane %v1668, 2
        %v1670 = vadd.f32 %v1668, %v1669
        %v1671 = vrot.slane %v1670, 1
        %v1672 = vadd.f32 %v1670, %v1671
        %v1675 = vcombine.low %v1603, %v1672
        %v1677 = vunpack.c.l.s4 1966171168
        %v1678 = vunpack.c.0.s8 %v1677
        %v1679 = vlaneseq
        %v1680 = vshrl.u32 %v1679, 7
        %v1681 = vsub.s32 %v1678, %v1680
        %v1682 = vrot.slane %v1675, %v1681
        %v1684 = vunpack.c.l.s4 1966171168
        %v1685 = vunpack.c.0.s8 %v1684
        %v1686 = vlaneseq
        %v1687 = vshrl.u32 %v1686, 7
        %v1688 = vsub.s32 %v1685, %v1687
        %v1689 = vrot.slane %v1682, %v1688
        %v1691 = vadd.f32 %v1534, %v1689
        %v1692 = vlaneseq
        %vm1693 = vcmp.ge.s32.totalorder %v1692, 0
        %vm1694 = vcmp.lt.s32.totalorder %v1692, 256
        %vm1695 = vmand %vm1693, %vm1694
        %1696 = vst.msk [vmem:[%s298] sm:$0x3] %vm1695, %v1691
        // Predicated region
        $region53: #{tpu_custom_call.1} parent=39 // pred_check
          %p1697 = pneg %p317
        $region54: #{tpu_custom_call.1} parent=39 // pred_check_branch
          %1699 = sbr.rel (%p1697) target = $region56
        $region55: #{tpu_custom_call.1} parent=39 // pred_region
          %v1700 = vld [vmem:[%s309] sm:$0x3]
          %v1701 = vld [vmem:[%s298] sm:$0x3]
          %v1702 = vlog2.pop %v1701
          %v1703 = vmul.f32 %v1702, 0.6931472
          %v1704 = vsub.f32 %v1700, %v1703
          %v1705 = vld [vmem:[%s314] sm:$0x3]
          %v1706 = vmul.f32 %v1704, %v1705
          %1707 = vst.msk [vmem:[%s298] sm:$0x3] %vm1695, %v1706
        $region56: #{tpu_custom_call.1} parent=39 // pred_fallthru
          _
        %s1708 = sand.u32 %s171, 1
        %s1709 = scalar_lea.sflag [#allocation4], %s1708
        %s1710 = sand.u32 %s171, 1
        %s1711 = smul.addr %s1710, 2
        %s1712 = scalar_lea.vmem [#allocation7], %s1711
        // Predicated region
        $region57: #{tpu_custom_call.1} parent=39 // pred_check
          %p1713 = pneg %p181
        $region58: #{tpu_custom_call.1} parent=39 // pred_check_branch
          %1715 = sbr.rel (%p1713) target = $region60
        $region59: #{tpu_custom_call.1} parent=39 // pred_region
          %s1716 = smul.u32 2, %s25
          %s1718 = ssub.s32 32, 32
          %1719 = vsyncadd %s1709, %s1718
          %s1720 = smul.addr %s1716, 16
          %s1721 = scalar_lea.hbm %s5, %s1720
          %s1723 = sshll.u32 %s1712, 4
          %s1724 = int_to_ptr.vmem [resolvable:$true] %s1723
          %1726 = dma.vmem_to_hbm [thread:$0]  %s1724, 32, %s1721, %s1709
        $region60: #{tpu_custom_call.1} parent=39 // pred_fallthru
          _
      $region40: #{tpu_custom_call.1} parent=5 // pred_fallthru
        _
      %p1727 = scmp.le.s32.totalorder 2, %s16
      // Predicated region
      $region61: #{tpu_custom_call.1} parent=5 // pred_check
        %p1728 = pneg %p1727
      $region62: #{tpu_custom_call.1} parent=5 // pred_check_branch
        %1730 = sbr.rel (%p1728) target = $region64
      $region63: #{tpu_custom_call.1} parent=5 // pred_region
        %s1731 = ssub.s32 %s16, 2
        // Predicated region
        $region65: #{tpu_custom_call.1} parent=63 // pred_check
          %p1732 = pneg %p187
        $region66: #{tpu_custom_call.1} parent=63 // pred_check_branch
          %1734 = sbr.rel (%p1732) target = $region68
        $region67: #{tpu_custom_call.1} parent=63 // pred_region
          %s1735 = sand.u32 %s172, 1
          %s1736 = scalar_lea.sflag [#allocation4], %s1735
          %s1737 = sand.u32 %s172, 1
          %s1738 = smul.addr %s1737, 2
          %s1739 = scalar_lea.vmem [#allocation7], %s1738
          %1740 = dma.done %s1736, 32
        $region68: #{tpu_custom_call.1} parent=63 // pred_fallthru
          _
      $region64: #{tpu_custom_call.1} parent=5 // pred_fallthru
        _
    $region6: #{tpu_custom_call.1} parent=1 // loop_footer
      %s20 = sadd.s32 1, %s16
    $region7: #{tpu_custom_call.1} parent=1 // loop_footer_branch
      %15 = sbr.rel target = $region3
    $region8: #{tpu_custom_call.1} parent=1 // loop_exit
      _
    %1741 = vsyncpa [#allocation3], 1
    %s1742 = scalar_lea.sflag [#allocation3], 1
    %1743 = vsyncpa %s1742, 1
    %1744 = vsyncpa [#allocation6], 1
    %1745 = vsyncpa [#allocation4], 1
    %s1746 = scalar_lea.sflag [#allocation4], 1
    %1747 = vsyncpa %s1746, 1

</llo_original>
